<compile_context>
chip_gen: v7x
topology: tpu7x:2x2x1
jax: 0.10.0
libtpu: 0.0.40
codegen_flags: <defaults>
</compile_context>

<pallas_src>
import functools

import jax
import jax.numpy as jnp
from jax.experimental import pallas as pl
from jax.experimental.pallas import tpu as pltpu


# --------------------------------------------------------------------------
# Pallas kernel: whole forward hot path in one kernel (single grid point —
# all operands fit comfortably in VMEM at these sizes).
# --------------------------------------------------------------------------
def _aa_gcn_kernel(*refs, lg, hgc, jk_pad):
    l_ref, l2_ref, x_ref = refs[0], refs[1], refs[2]
    w_refs = refs[3:3 + lg]                                   # fused Cheb weights (bf16)
    cw1_ref, cb1_ref, cw2_ref, cb2_ref = refs[3 + lg:7 + lg]
    jk_ref, logit_ref = refs[7 + lg], refs[8 + lg]

    L = l_ref[...]        # (N, N) bf16
    L2 = l2_ref[...]      # (N, N) bf16  == L @ L (precomputed f32 in wrapper)

    def cheb_relu(h_f32, w_fused_bf16):
        # ChebConv (K=3, bias=False), fused into one feature matmul:
        #   T0 = h, T1 = L h, T2 = 2 L^2 h - h
        #   out = T0 Θ0 + T1 Θ1 + T2 Θ2 = [h | Lh | L^2 h] @ [Θ0-Θ2 ; Θ1 ; 2Θ2]
        # All operands bf16, accumulation f32.
        hb = h_f32.astype(jnp.bfloat16)
        t1 = jnp.dot(L, hb, preferred_element_type=jnp.float32)    # independent push
        t2 = jnp.dot(L2, hb, preferred_element_type=jnp.float32)   # independent push
        # bf16 lane concat (review item 3: alternative is 3 accumulated dots;
        # pick by bundle count — keeping the single-push fused form here).
        xcat = jnp.concatenate(
            [hb, t1.astype(jnp.bfloat16), t2.astype(jnp.bfloat16)], axis=-1)
        out = jnp.dot(xcat, w_fused_bf16, preferred_element_type=jnp.float32)
        return jnp.maximum(out, 0.0)                               # ReLU (f32)

    # ChebConv layers (static unroll), keep per-layer activations for JK concat
    hs = []
    h = x_ref[...]
    for i in range(lg):
        h = cheb_relu(h, w_refs[i][...])
        hs.append(h)

    # JK concat: one full 128-lane (padded) unmasked store of the f32 slab
    n_rows = hs[0].shape[0]
    jk_f32 = jnp.concatenate(hs, axis=-1)                     # (N, lg*hgc) f32
    pad = jk_pad - lg * hgc
    if pad > 0:
        jk_ref[...] = jnp.concatenate(
            [jk_f32, jnp.zeros((n_rows, pad), jnp.float32)], axis=-1)
    else:
        jk_ref[...] = jk_f32

    # Classifier: single K=lg*hgc push instead of per-layer narrow-K pushes.
    z = jnp.dot(jk_f32.astype(jnp.bfloat16), cw1_ref[...],
                preferred_element_type=jnp.float32)
    z = jnp.maximum(z + cb1_ref[...], 0.0)                    # bias + ReLU
    # BatchNorm (eval) is folded into cw2/cb2; output padded to 128 lanes.
    logit_ref[...] = (jnp.dot(z.astype(jnp.bfloat16), cw2_ref[...],
                              preferred_element_type=jnp.float32)
                      + cb2_ref[...])


# --------------------------------------------------------------------------
# Wrapper: weight fusion, BN folding, bf16 casts, lane padding, cost estimate,
# pallas_call.
# --------------------------------------------------------------------------
def aa_gcn_forward(lhat, x, cheb_weights, cw1, cb1, bn, cw2, cb2, *, bn_eps=1e-5):
    n, din = x.shape
    lg = len(cheb_weights)
    k_order = int(cheb_weights[0].shape[0])
    assert k_order == 3, "fused kernel supports Chebyshev order K=3 only"
    hgc = int(cheb_weights[0].shape[-1])
    hidden_cls = int(cw1.shape[-1])
    num_classes = int(cw2.shape[-1])
    lane = 128
    jk_pad = max(lane, ((lg * hgc + lane - 1) // lane) * lane)
    logit_pad = max(lane, ((num_classes + lane - 1) // lane) * lane)

    # --- fuse K=3 Chebyshev weights into one lane-dense (3*Fin, Fout) bf16 slab ---
    def fuse(w):                              # w: (3, Fin, Fout)
        return jnp.concatenate([w[0] - w[2], w[1], 2.0 * w[2]],
                               axis=0).astype(jnp.bfloat16)

    w_fused = [fuse(w) for w in cheb_weights]

    # --- fold eval-mode BatchNorm1d into the final Linear, pad to 128 lanes, bf16 ---
    gamma, beta, mean, var = bn[0], bn[1], bn[2], bn[3]
    s = gamma * jax.lax.rsqrt(var + bn_eps)                   # (256,)
    cw2_f = cw2 * s[:, None]                                  # (256, C)
    cb2_f = cb2 + (beta - mean * s) @ cw2                     # (1, C)
    cw2_p = (jnp.zeros((hidden_cls, logit_pad), jnp.float32)
             .at[:, :num_classes].set(cw2_f)).astype(jnp.bfloat16)
    cb2_p = jnp.zeros((1, logit_pad), jnp.float32).at[:, :num_classes].set(cb2_f)
    cw1_bf = cw1.astype(jnp.bfloat16)

    # --- bf16 propagation operands; L^2 precomputed once (breaks the L@(L@h) chain).
    # NOTE: assumes lambda_max=2.0 + normalization='sym' (L_hat = -A_norm).
    l2 = lhat @ lhat
    l_bf = lhat.astype(jnp.bfloat16)
    l2_bf = l2.astype(jnp.bfloat16)

    # --- advisory cost estimate for the XLA scheduler ---
    flops = 0
    fin = din
    for _ in range(lg):
        flops += 2 * (2 * n * n * fin)            # two (N,N)@(N,Fin) pushes
        flops += 2 * n * (3 * fin) * hgc          # fused feature matmul
        fin = hgc
    flops += 2 * n * (lg * hgc) * hidden_cls + 2 * n * hidden_cls * logit_pad
    bytes_bf16 = 2 * (2 * n * n
                      + sum(int(w.size) for w in w_fused)
                      + int(cw1_bf.size) + int(cw2_p.size))
    bytes_f32 = 4 * (n * din + int(cb1.size) + int(cb2_p.size)
                     + n * jk_pad + n * logit_pad)
    bytes_accessed = bytes_bf16 + bytes_f32

    kernel = functools.partial(_aa_gcn_kernel, lg=lg, hgc=hgc, jk_pad=jk_pad)
    vmem = pl.BlockSpec(memory_space=pltpu.MemorySpace.VMEM)
    n_in = 7 + lg

    jk_p, logit_p = pl.pallas_call(
        kernel,
        out_shape=(
            jax.ShapeDtypeStruct((n, jk_pad), jnp.float32),      # padded h0 / jk
            jax.ShapeDtypeStruct((n, logit_pad), jnp.float32),   # padded logits
        ),
        in_specs=[vmem] * n_in,
        out_specs=(vmem, vmem),
        cost_estimate=pl.CostEstimate(flops=int(flops), transcendentals=0,
                                      bytes_accessed=int(bytes_accessed)),
    )(l_bf, l2_bf, x, *w_fused, cw1_bf, cb1, cw2_p, cb2_p)

    return jk_p[:, :lg * hgc], logit_p[:, :num_classes]


# --------------------------------------------------------------------------
# Plain-JAX glue: dense scaled Laplacian, matching ChebConv(sym, lambda_max=2)
# --------------------------------------------------------------------------
def scaled_laplacian(edge_index, edge_weight, num_nodes):
    row, col = edge_index[0], edge_index[1]
    keep = row != col                        # remove_self_loops
    w = jnp.where(keep, edge_weight, 0.0)
    adj = jnp.zeros((num_nodes, num_nodes), jnp.float32).at[row, col].add(w)
    deg = adj.sum(axis=1)
    dinv = jnp.where(deg > 0, 1.0 / jnp.sqrt(deg), 0.0)
    a_norm = dinv[:, None] * adj * dinv[None, :]
    # lambda_max = 2.0  ->  L_hat = 2*(I - A_norm)/2 - I = -A_norm
    return -a_norm


# --------------------------------------------------------------------------
# Pure-JAX f32 reference (same eval semantics) for tolerance validation
# --------------------------------------------------------------------------
def aa_gcn_reference(lhat, x, cheb_weights, cw1, cb1, bn, cw2, cb2, bn_eps=1e-5):
    hs = []
    h = x
    for w in cheb_weights:
        t0 = h
        t1 = lhat @ h
        t2 = 2.0 * (lhat @ t1) - h
        h = jnp.maximum(t0 @ w[0] + t1 @ w[1] + t2 @ w[2], 0.0)
        hs.append(h)
    jk = jnp.concatenate(hs, axis=-1)
    z = jnp.maximum(jk @ cw1 + cb1, 0.0)
    gamma, beta, mean, var = bn[0], bn[1], bn[2], bn[3]
    z = (z - mean) * gamma * jax.lax.rsqrt(var + bn_eps) + beta
    return jk, z @ cw2 + cb2


# --------------------------------------------------------------------------
# Driver
# --------------------------------------------------------------------------
if __name__ == "__main__":
    N = 64            # number of graph nodes
    INPUT_DIM = 32
    HGC = 16          # hidden per ChebConv layer
    LG = 3            # number of ChebConv layers (>=2 so `jk` is defined)
    K = 3             # Chebyshev order
    NUM_CLASSES = 4
    CLS_IN = LG * HGC

    key = jax.random.PRNGKey(0)
    keys = jax.random.split(key, 10)

    # node features
    x = jax.random.normal(keys[0], (N, INPUT_DIM), jnp.float32)

    # deterministic ring graph (both directions), positive edge weights
    src = jnp.arange(N, dtype=jnp.int32)
    dst = (src + 1) % N
    edge_index = jnp.stack([jnp.concatenate([src, dst]),
                            jnp.concatenate([dst, src])], axis=0)   # (2, 2N)
    ew_half = 0.5 + jax.random.uniform(keys[1], (N,), jnp.float32)
    edge_weight = jnp.concatenate([ew_half, ew_half])               # symmetric

    lhat = scaled_laplacian(edge_index, edge_weight, N)

    # --- deterministic parameter init ---
    def kaiming(k, shape):                  # fan_in = shape[0] (x @ W layout)
        return jax.random.normal(k, shape, jnp.float32) * jnp.sqrt(2.0 / shape[0])

    def glorot(k, shape):                   # ChebConv-style init
        fan_in, fan_out = shape[-2], shape[-1]
        return jax.random.normal(k, shape, jnp.float32) * jnp.sqrt(
            2.0 / (fan_in + fan_out))

    cheb_ws = [glorot(keys[2], (K, INPUT_DIM, HGC))]        # ChebConv 0
    wrest = glorot(keys[3], (LG - 1, K, HGC, HGC))          # ChebConv 1..lg-1
    cheb_ws += [wrest[i] for i in range(LG - 1)]

    cw1 = kaiming(keys[4], (CLS_IN, 256))                   # Linear(cls_in, 256)
    cb1 = jnp.zeros((1, 256), jnp.float32)
    # BatchNorm1d(256) params (eval): gamma=1, beta=0, running_mean=0, var=1
    bn = jnp.stack([jnp.ones((256,), jnp.float32),
                    jnp.zeros((256,), jnp.float32),
                    jnp.zeros((256,), jnp.float32),
                    jnp.ones((256,), jnp.float32)], axis=0)
    cw2 = kaiming(keys[5], (256, NUM_CLASSES))              # Linear(256, classes)
    cb2 = jnp.zeros((1, NUM_CLASSES), jnp.float32)

    h0, logit = aa_gcn_forward(lhat, x, cheb_ws, cw1, cb1, bn, cw2, cb2)
    jax.block_until_ready((h0, logit))

    assert h0.shape == (N, LG * HGC) and logit.shape == (N, NUM_CLASSES)
    assert bool(jnp.all(jnp.isfinite(h0))) and bool(jnp.all(jnp.isfinite(logit)))

    # f32 reference check (bf16-in / f32-acc kernel -> scale-relative tolerance)
    h0_ref, logit_ref = aa_gcn_reference(lhat, x, cheb_ws, cw1, cb1, bn, cw2, cb2)

    def rel_max_err(a, b):
        scale = jnp.maximum(jnp.max(jnp.abs(b)), 1.0)
        return float(jnp.max(jnp.abs(a - b)) / scale)

    assert rel_max_err(h0, h0_ref) < 0.1, "jk mismatch vs f32 reference"
    assert rel_max_err(logit, logit_ref) < 0.1, "logit mismatch vs f32 reference"

    print("KERNEL_OK")
</pallas_src>

<mosaic_0001>
module attributes {stable_mosaic.version = 11 : i64} {
  func.func @_aa_gcn_kernel(%arg0: memref<64x64xbf16, #tpu.memory_space<vmem>>, %arg1: memref<64x64xbf16, #tpu.memory_space<vmem>>, %arg2: memref<64x32xf32, #tpu.memory_space<vmem>>, %arg3: memref<96x16xbf16, #tpu.memory_space<vmem>>, %arg4: memref<48x16xbf16, #tpu.memory_space<vmem>>, %arg5: memref<48x16xbf16, #tpu.memory_space<vmem>>, %arg6: memref<48x256xbf16, #tpu.memory_space<vmem>>, %arg7: memref<1x256xf32, #tpu.memory_space<vmem>>, %arg8: memref<256x128xbf16, #tpu.memory_space<vmem>>, %arg9: memref<1x128xf32, #tpu.memory_space<vmem>>, %arg10: memref<64x128xf32, #tpu.memory_space<vmem>>, %arg11: memref<64x128xf32, #tpu.memory_space<vmem>>) attributes {dimension_semantics = [], scalar_prefetch = 0 : i64, scratch_operands = 0 : i64, tpu.core_type = #tpu.core_type<tc>} {
    %c0 = arith.constant 0 : index
    %c0_0 = arith.constant 0 : index
    %0 = vector.load %arg0[%c0, %c0_0] : memref<64x64xbf16, #tpu.memory_space<vmem>>, vector<64x64xbf16>
    %c0_1 = arith.constant 0 : index
    %c0_2 = arith.constant 0 : index
    %1 = vector.load %arg1[%c0_1, %c0_2] : memref<64x64xbf16, #tpu.memory_space<vmem>>, vector<64x64xbf16>
    %c0_3 = arith.constant 0 : index
    %c0_4 = arith.constant 0 : index
    %2 = vector.load %arg2[%c0_3, %c0_4] : memref<64x32xf32, #tpu.memory_space<vmem>>, vector<64x32xf32>
    %c0_5 = arith.constant 0 : index
    %c0_6 = arith.constant 0 : index
    %3 = vector.load %arg3[%c0_5, %c0_6] : memref<96x16xbf16, #tpu.memory_space<vmem>>, vector<96x16xbf16>
    %4 = arith.truncf %2 : vector<64x32xf32> to vector<64x32xbf16>
    %cst = arith.constant dense<0.000000e+00> : vector<64x32xf32>
    %5 = tpu.matmul %0, %4, %cst {dimension_numbers = #tpu.dot_dimension_numbers<[1], [0], [0], [1], [0, 0, 1, 1], [], []>} : vector<64x64xbf16>, vector<64x32xbf16>, vector<64x32xf32> -> vector<64x32xf32>
    %cst_7 = arith.constant dense<0.000000e+00> : vector<64x32xf32>
    %6 = tpu.matmul %1, %4, %cst_7 {dimension_numbers = #tpu.dot_dimension_numbers<[1], [0], [0], [1], [0, 0, 1, 1], [], []>} : vector<64x64xbf16>, vector<64x32xbf16>, vector<64x32xf32> -> vector<64x32xf32>
    %7 = arith.truncf %5 : vector<64x32xf32> to vector<64x32xbf16>
    %8 = arith.truncf %6 : vector<64x32xf32> to vector<64x32xbf16>
    %9 = tpu.concatenate %4, %7, %8 in 1 : vector<64x32xbf16>, vector<64x32xbf16>, vector<64x32xbf16> -> vector<64x96xbf16>
    %cst_8 = arith.constant dense<0.000000e+00> : vector<64x16xf32>
    %10 = tpu.matmul %9, %3, %cst_8 {dimension_numbers = #tpu.dot_dimension_numbers<[1], [0], [0], [1], [0, 0, 1, 1], [], []>} : vector<64x96xbf16>, vector<96x16xbf16>, vector<64x16xf32> -> vector<64x16xf32>
    %cst_9 = arith.constant 0.000000e+00 : f32
    %11 = vector.broadcast %cst_9 : f32 to vector<64x16xf32>
    %12 = arith.maximumf %10, %11 : vector<64x16xf32>
    %c0_10 = arith.constant 0 : index
    %c0_11 = arith.constant 0 : index
    %13 = vector.load %arg4[%c0_10, %c0_11] : memref<48x16xbf16, #tpu.memory_space<vmem>>, vector<48x16xbf16>
    %14 = arith.truncf %12 : vector<64x16xf32> to vector<64x16xbf16>
    %cst_12 = arith.constant dense<0.000000e+00> : vector<64x16xf32>
    %15 = tpu.matmul %0, %14, %cst_12 {dimension_numbers = #tpu.dot_dimension_numbers<[1], [0], [0], [1], [0, 0, 1, 1], [], []>} : vector<64x64xbf16>, vector<64x16xbf16>, vector<64x16xf32> -> vector<64x16xf32>
    %cst_13 = arith.constant dense<0.000000e+00> : vector<64x16xf32>
    %16 = tpu.matmul %1, %14, %cst_13 {dimension_numbers = #tpu.dot_dimension_numbers<[1], [0], [0], [1], [0, 0, 1, 1], [], []>} : vector<64x64xbf16>, vector<64x16xbf16>, vector<64x16xf32> -> vector<64x16xf32>
    %17 = arith.truncf %15 : vector<64x16xf32> to vector<64x16xbf16>
    %18 = arith.truncf %16 : vector<64x16xf32> to vector<64x16xbf16>
    %19 = tpu.concatenate %14, %17, %18 in 1 : vector<64x16xbf16>, vector<64x16xbf16>, vector<64x16xbf16> -> vector<64x48xbf16>
    %cst_14 = arith.constant dense<0.000000e+00> : vector<64x16xf32>
    %20 = tpu.matmul %19, %13, %cst_14 {dimension_numbers = #tpu.dot_dimension_numbers<[1], [0], [0], [1], [0, 0, 1, 1], [], []>} : vector<64x48xbf16>, vector<48x16xbf16>, vector<64x16xf32> -> vector<64x16xf32>
    %cst_15 = arith.constant 0.000000e+00 : f32
    %21 = vector.broadcast %cst_15 : f32 to vector<64x16xf32>
    %22 = arith.maximumf %20, %21 : vector<64x16xf32>
    %c0_16 = arith.constant 0 : index
    %c0_17 = arith.constant 0 : index
    %23 = vector.load %arg5[%c0_16, %c0_17] : memref<48x16xbf16, #tpu.memory_space<vmem>>, vector<48x16xbf16>
    %24 = arith.truncf %22 : vector<64x16xf32> to vector<64x16xbf16>
    %cst_18 = arith.constant dense<0.000000e+00> : vector<64x16xf32>
    %25 = tpu.matmul %0, %24, %cst_18 {dimension_numbers = #tpu.dot_dimension_numbers<[1], [0], [0], [1], [0, 0, 1, 1], [], []>} : vector<64x64xbf16>, vector<64x16xbf16>, vector<64x16xf32> -> vector<64x16xf32>
    %cst_19 = arith.constant dense<0.000000e+00> : vector<64x16xf32>
    %26 = tpu.matmul %1, %24, %cst_19 {dimension_numbers = #tpu.dot_dimension_numbers<[1], [0], [0], [1], [0, 0, 1, 1], [], []>} : vector<64x64xbf16>, vector<64x16xbf16>, vector<64x16xf32> -> vector<64x16xf32>
    %27 = arith.truncf %25 : vector<64x16xf32> to vector<64x16xbf16>
    %28 = arith.truncf %26 : vector<64x16xf32> to vector<64x16xbf16>
    %29 = tpu.concatenate %24, %27, %28 in 1 : vector<64x16xbf16>, vector<64x16xbf16>, vector<64x16xbf16> -> vector<64x48xbf16>
    %cst_20 = arith.constant dense<0.000000e+00> : vector<64x16xf32>
    %30 = tpu.matmul %29, %23, %cst_20 {dimension_numbers = #tpu.dot_dimension_numbers<[1], [0], [0], [1], [0, 0, 1, 1], [], []>} : vector<64x48xbf16>, vector<48x16xbf16>, vector<64x16xf32> -> vector<64x16xf32>
    %cst_21 = arith.constant 0.000000e+00 : f32
    %31 = vector.broadcast %cst_21 : f32 to vector<64x16xf32>
    %32 = arith.maximumf %30, %31 : vector<64x16xf32>
    %33 = tpu.concatenate %12, %22, %32 in 1 : vector<64x16xf32>, vector<64x16xf32>, vector<64x16xf32> -> vector<64x48xf32>
    %cst_22 = arith.constant 0.000000e+00 : f32
    %34 = vector.broadcast %cst_22 : f32 to vector<64x80xf32>
    %35 = tpu.concatenate %33, %34 in 1 : vector<64x48xf32>, vector<64x80xf32> -> vector<64x128xf32>
    %c0_23 = arith.constant 0 : index
    %c0_24 = arith.constant 0 : index
    %36 = vector.load %arg10[%c0_23, %c0_24] : memref<64x128xf32, #tpu.memory_space<vmem>>, vector<64x128xf32>
    tpu.vector_store %arg10[%c0_23, %c0_24], %35 {strides = array<i32>} : memref<64x128xf32, #tpu.memory_space<vmem>>, vector<64x128xf32>,
    %37 = arith.truncf %33 : vector<64x48xf32> to vector<64x48xbf16>
    %c0_25 = arith.constant 0 : index
    %c0_26 = arith.constant 0 : index
    %38 = vector.load %arg6[%c0_25, %c0_26] : memref<48x256xbf16, #tpu.memory_space<vmem>>, vector<48x256xbf16>
    %cst_27 = arith.constant dense<0.000000e+00> : vector<64x256xf32>
    %39 = tpu.matmul %37, %38, %cst_27 {dimension_numbers = #tpu.dot_dimension_numbers<[1], [0], [0], [1], [0, 0, 1, 1], [], []>} : vector<64x48xbf16>, vector<48x256xbf16>, vector<64x256xf32> -> vector<64x256xf32>
    %c0_28 = arith.constant 0 : index
    %c0_29 = arith.constant 0 : index
    %40 = vector.load %arg7[%c0_28, %c0_29] : memref<1x256xf32, #tpu.memory_space<vmem>>, vector<1x256xf32>
    %41 = vector.broadcast %40 : vector<1x256xf32> to vector<64x256xf32>
    %42 = arith.addf %39, %41 : vector<64x256xf32>
    %cst_30 = arith.constant 0.000000e+00 : f32
    %43 = vector.broadcast %cst_30 : f32 to vector<64x256xf32>
    %44 = arith.maximumf %42, %43 : vector<64x256xf32>
    %45 = arith.truncf %44 : vector<64x256xf32> to vector<64x256xbf16>
    %c0_31 = arith.constant 0 : index
    %c0_32 = arith.constant 0 : index
    %46 = vector.load %arg8[%c0_31, %c0_32] : memref<256x128xbf16, #tpu.memory_space<vmem>>, vector<256x128xbf16>
    %cst_33 = arith.constant dense<0.000000e+00> : vector<64x128xf32>
    %47 = tpu.matmul %45, %46, %cst_33 {dimension_numbers = #tpu.dot_dimension_numbers<[1], [0], [0], [1], [0, 0, 1, 1], [], []>} : vector<64x256xbf16>, vector<256x128xbf16>, vector<64x128xf32> -> vector<64x128xf32>
    %c0_34 = arith.constant 0 : index
    %c0_35 = arith.constant 0 : index
    %48 = vector.load %arg9[%c0_34, %c0_35] : memref<1x128xf32, #tpu.memory_space<vmem>>, vector<1x128xf32>
    %49 = vector.broadcast %48 : vector<1x128xf32> to vector<64x128xf32>
    %50 = arith.addf %47, %49 : vector<64x128xf32>
    %c0_36 = arith.constant 0 : index
    %c0_37 = arith.constant 0 : index
    %51 = vector.load %arg11[%c0_36, %c0_37] : memref<64x128xf32, #tpu.memory_space<vmem>>, vector<64x128xf32>
    tpu.vector_store %arg11[%c0_36, %c0_37], %50 {strides = array<i32>} : memref<64x128xf32, #tpu.memory_space<vmem>>, vector<64x128xf32>,
    return
  }
}

</mosaic_0001>

<llo_original>
// kernel: tpu_custom_call.1
$region0: #{tpu_custom_call.1}
  #allocation0 [shape = 'u32[]', space=smem, size = 0x4, offset = 0x4, fixed_abs, tag = 'smem constant byte address 0x4 - core index']
  #allocation1 [shape = 'u32[144,128]{1,0:T(1,128)}', space=vmem, size = 0x12000, scoped, tag = 'internal scratch']
  %s0 = inlined_call_operand.vmem [shape: bf16[64,64], index: 0, kind: input, shape index: {}]
  %s1 = inlined_call_operand.vmem [shape: bf16[64,64], index: 1, kind: input, shape index: {}]
  %s2 = inlined_call_operand.vmem [shape: f32[64,32], index: 2, kind: input, shape index: {}]
  %s3 = inlined_call_operand.vmem [shape: bf16[96,16], index: 3, kind: input, shape index: {}]
  %s4 = inlined_call_operand.vmem [shape: bf16[48,16], index: 4, kind: input, shape index: {}]
  %s5 = inlined_call_operand.vmem [shape: bf16[48,16], index: 5, kind: input, shape index: {}]
  %s6 = inlined_call_operand.vmem [shape: bf16[48,256], index: 6, kind: input, shape index: {}]
  %s7 = inlined_call_operand.vmem [shape: f32[1,256], index: 7, kind: input, shape index: {}]
  %s8 = inlined_call_operand.vmem [shape: bf16[256,128], index: 8, kind: input, shape index: {}]
  %s9 = inlined_call_operand.vmem [shape: f32[1,128], index: 9, kind: input, shape index: {}]
  %s10 = inlined_call_operand.hbm [shape: f32[64,128], index: 10, kind: output, shape index: {0}]
  %s11 = inlined_call_operand.hbm [shape: f32[64,128], index: 11, kind: output, shape index: {1}]
  %12 = xla_tuple %s10, %s11
  %s13 = sld [smem:[#allocation0]]
  $region58: #{tpu_custom_call.1} parent=0
    _
  %s15 = ssub.s32 1, %s13
  %s16 = scalar_select 0, %s15, %s13
  $region1: #{tpu_custom_call.1} parent=0
    #allocation2 [shape = 'u8[32768]{0}', space=vmem, size = 0x8000, scoped, tag = 'output window, operand 0, single buffered']
    #allocation3 [shape = 's32[1]{0}', space=sflag, size = 0x4, scoped, tag = 'scoped memory for tpu_custom_call.1']
    #allocation4 [shape = 'u8[32768]{0}', space=vmem, size = 0x8000, scoped, tag = 'output window, operand 1, single buffered']
    #allocation5 [shape = 's32[1]{0}', space=sflag, size = 0x4, scoped, tag = 'scoped memory for tpu_custom_call.1']
    %17 = vsyncpa [#allocation3], 0
    %18 = vsyncpa [#allocation5], 0
    // Predicated region
    $region2: #{tpu_custom_call.1} parent=1 // pred_check
      _
    $region3: #{tpu_custom_call.1} parent=1 // pred_check_branch
      %20 = sbr.rel (0) target = $region5
    $region4: #{tpu_custom_call.1} parent=1 // pred_region
      _
    $region5: #{tpu_custom_call.1} parent=1 // pred_fallthru
      _
    // Predicated region
    $region6: #{tpu_custom_call.1} parent=1 // pred_check
      _
    $region7: #{tpu_custom_call.1} parent=1 // pred_check_branch
      %22 = sbr.rel (0) target = $region9
    $region8: #{tpu_custom_call.1} parent=1 // pred_region
      _
    $region9: #{tpu_custom_call.1} parent=1 // pred_fallthru
      _
    // Predicated region
    $region10: #{tpu_custom_call.1} parent=1 // pred_check
      _
    $region11: #{tpu_custom_call.1} parent=1 // pred_check_branch
      %24 = sbr.rel (0) target = $region13
    $region12: #{tpu_custom_call.1} parent=1 // pred_region
      _
    $region13: #{tpu_custom_call.1} parent=1 // pred_fallthru
      _
    // Predicated region
    $region14: #{tpu_custom_call.1} parent=1 // pred_check
      _
    $region15: #{tpu_custom_call.1} parent=1 // pred_check_branch
      %26 = sbr.rel (0) target = $region17
    $region16: #{tpu_custom_call.1} parent=1 // pred_region
      _
    $region17: #{tpu_custom_call.1} parent=1 // pred_fallthru
      _
    // Predicated region
    $region18: #{tpu_custom_call.1} parent=1 // pred_check
      _
    $region19: #{tpu_custom_call.1} parent=1 // pred_check_branch
      %28 = sbr.rel (0) target = $region21
    $region20: #{tpu_custom_call.1} parent=1 // pred_region
      _
    $region21: #{tpu_custom_call.1} parent=1 // pred_fallthru
      _
    // Predicated region
    $region22: #{tpu_custom_call.1} parent=1 // pred_check
      _
    $region23: #{tpu_custom_call.1} parent=1 // pred_check_branch
      %30 = sbr.rel (0) target = $region25
    $region24: #{tpu_custom_call.1} parent=1 // pred_region
      _
    $region25: #{tpu_custom_call.1} parent=1 // pred_fallthru
      _
    // Predicated region
    $region26: #{tpu_custom_call.1} parent=1 // pred_check
      _
    $region27: #{tpu_custom_call.1} parent=1 // pred_check_branch
      %32 = sbr.rel (0) target = $region29
    $region28: #{tpu_custom_call.1} parent=1 // pred_region
      _
    $region29: #{tpu_custom_call.1} parent=1 // pred_fallthru
      _
    // Predicated region
    $region30: #{tpu_custom_call.1} parent=1 // pred_check
      _
    $region31: #{tpu_custom_call.1} parent=1 // pred_check_branch
      %34 = sbr.rel (0) target = $region33
    $region32: #{tpu_custom_call.1} parent=1 // pred_region
      _
    $region33: #{tpu_custom_call.1} parent=1 // pred_fallthru
      _
    // Predicated region
    $region34: #{tpu_custom_call.1} parent=1 // pred_check
      _
    $region35: #{tpu_custom_call.1} parent=1 // pred_check_branch
      %36 = sbr.rel (0) target = $region37
    $region36: #{tpu_custom_call.1} parent=1 // pred_region
      _
    $region37: #{tpu_custom_call.1} parent=1 // pred_fallthru
      _
    // Predicated region
    $region38: #{tpu_custom_call.1} parent=1 // pred_check
      _
    $region39: #{tpu_custom_call.1} parent=1 // pred_check_branch
      %38 = sbr.rel (0) target = $region41
    $region40: #{tpu_custom_call.1} parent=1 // pred_region
      _
    $region41: #{tpu_custom_call.1} parent=1 // pred_fallthru
      _
    %v40 = vld [vmem:[%s0] sm:$0xf]
    %v41 = vld [vmem:[%s0 + $0x4] sm:$0xf]
    %v42 = vld [vmem:[%s0 + $0x8] sm:$0xf]
    %v43 = vld [vmem:[%s0 + $0xc] sm:$0xf]
    %v44 = vld [vmem:[%s0 + $0x10] sm:$0xf]
    %v45 = vld [vmem:[%s0 + $0x14] sm:$0xf]
    %v46 = vld [vmem:[%s0 + $0x18] sm:$0xf]
    %v47 = vld [vmem:[%s0 + $0x1c] sm:$0xf]
    %v48 = vld [vmem:[%s1] sm:$0xf]
    %v49 = vld [vmem:[%s1 + $0x4] sm:$0xf]
    %v50 = vld [vmem:[%s1 + $0x8] sm:$0xf]
    %v51 = vld [vmem:[%s1 + $0xc] sm:$0xf]
    %v52 = vld [vmem:[%s1 + $0x10] sm:$0xf]
    %v53 = vld [vmem:[%s1 + $0x14] sm:$0xf]
    %v54 = vld [vmem:[%s1 + $0x18] sm:$0xf]
    %v55 = vld [vmem:[%s1 + $0x1c] sm:$0xf]
    %v56 = vld [vmem:[%s2] sm:$0xff]
    %v57 = vld [vmem:[%s2 + $0x8] sm:$0xff]
    %v58 = vld [vmem:[%s2 + $0x10] sm:$0xff]
    %v59 = vld [vmem:[%s2 + $0x18] sm:$0xff]
    %v60 = vld [vmem:[%s2 + $0x20] sm:$0xff]
    %v61 = vld [vmem:[%s2 + $0x28] sm:$0xff]
    %v62 = vld [vmem:[%s2 + $0x30] sm:$0xff]
    %v63 = vld [vmem:[%s2 + $0x38] sm:$0xff]
    %v64 = vld [vmem:[%s3] sm:$0xf]
    %v65 = vld [vmem:[%s3 + $0x4] sm:$0xf]
    %v66 = vld [vmem:[%s3 + $0x8] sm:$0xf]
    %v67 = vld [vmem:[%s3 + $0xc] sm:$0xf]
    %v68 = vld [vmem:[%s3 + $0x10] sm:$0xf]
    %v69 = vld [vmem:[%s3 + $0x14] sm:$0xf]
    %v70 = vld [vmem:[%s3 + $0x18] sm:$0xf]
    %v71 = vld [vmem:[%s3 + $0x1c] sm:$0xf]
    %v72 = vld [vmem:[%s3 + $0x20] sm:$0xf]
    %v73 = vld [vmem:[%s3 + $0x24] sm:$0xf]
    %v74 = vld [vmem:[%s3 + $0x28] sm:$0xf]
    %v75 = vld [vmem:[%s3 + $0x2c] sm:$0xf]
    %v76 = vpack.c.bf16 %v57, %v56
    %v77 = vpack.c.bf16 %v59, %v58
    %v78 = vpack.c.bf16 %v61, %v60
    %v79 = vpack.c.bf16 %v63, %v62
    %v88 = vunpack.c.l.b16 %v40
    %v89 = vunpack.c.l.b16 %v41
    %v90 = vunpack.c.l.b16 %v42
    %v91 = vunpack.c.l.b16 %v43
    %v92 = vunpack.c.l.b16 %v44
    %v93 = vunpack.c.l.b16 %v45
    %v94 = vunpack.c.l.b16 %v46
    %v95 = vunpack.c.l.b16 %v47
    %v96 = vpack.c.b16 %v89, %v88
    %v97 = vpack.c.b16 %v91, %v90
    %v98 = vpack.c.b16 %v93, %v92
    %v99 = vpack.c.b16 %v95, %v94
    %vm100 = vcmask 523264
    %v102 = vsel %vm100, %v96, 0
    %v105 = vsel %vm100, %v97, 0
    %v108 = vsel %vm100, %v98, 0
    %v111 = vsel %vm100, %v99, 0
    %113 = vmatprep.subr.bf16.mxu0 0
    %114 = vmatpush1.bf16.msra.mxu0 %v76
    %115 = vmatprep.subr.bf16.mxu0 0
    %116 = vmatpush1.bf16.msra.mxu0 %v77
    %117 = vmatprep.subr.bf16.mxu0 0
    %118 = vmatpush1.bf16.msra.mxu0 %v78
    %119 = vmatprep.subr.bf16.mxu0 0
    %120 = vmatpush1.bf16.msra.mxu0 %v79
    %121 = vmatprep.subr.bf16.mxu0 0
    %122 = vmatpush1.bf16.msra.mxu0 0
    %123 = vmatprep.subr.bf16.mxu0 0
    %124 = vmatpush1.bf16.msra.mxu0 0
    %125 = vmatprep.subr.bf16.mxu0 0
    %126 = vmatpush1.bf16.msra.mxu0 0
    %127 = vmatprep.subr.bf16.mxu0 0
    %128 = vmatpush1.bf16.msra.mxu0 0
    %129 = vmatprep.subr.bf16.mxu0 0
    %130 = vmatpush1.bf16.msra.mxu0 0
    %131 = vmatprep.subr.bf16.mxu0 0
    %132 = vmatpush1.bf16.msra.mxu0 0
    %133 = vmatprep.subr.bf16.mxu0 0
    %134 = vmatpush1.bf16.msra.mxu0 0
    %135 = vmatprep.subr.bf16.mxu0 0
    %136 = vmatpush1.bf16.msra.mxu0 0
    %137 = vmatprep.subr.bf16.mxu0 0
    %138 = vmatpush1.bf16.msra.mxu0 0
    %139 = vmatprep.subr.bf16.mxu0 0
    %140 = vmatpush1.bf16.msra.mxu0 0
    %141 = vmatprep.subr.bf16.mxu0 0
    %142 = vmatpush1.bf16.msra.mxu0 0
    %143 = vmatprep.subr.bf16.mxu0 0
    %144 = vmatpush1.bf16.msra.mxu0 0
    %145 = vmatprep.mubr.bf16.mxu0 0
    %146 = vmatmul.mubr.bf16.gmra.mrb[0].mxu0 %v102
    %v147 = vpop.f32.mrb[0].mxu0
    %v148 = vadd.f32 0.0, %v147
    %v149 = vpop.f32.mrb[0].mxu0
    %v150 = vpop.f32.mrb[0].mxu0
    %v151 = vadd.f32 0.0, %v150
    %v152 = vpop.f32.mrb[0].mxu0
    %153 = vmatprep.mubr.bf16.mxu0 0
    %154 = vmatmul.mubr.bf16.gmra.mrb[0].mxu0 %v105
    %v155 = vpop.f32.mrb[0].mxu0
    %v156 = vadd.f32 0.0, %v155
    %v157 = vpop.f32.mrb[0].mxu0
    %v158 = vpop.f32.mrb[0].mxu0
    %v159 = vadd.f32 0.0, %v158
    %v160 = vpop.f32.mrb[0].mxu0
    %161 = vmatprep.mubr.bf16.mxu0 0
    %162 = vmatmul.mubr.bf16.gmra.mrb[0].mxu0 %v108
    %v163 = vpop.f32.mrb[0].mxu0
    %v164 = vadd.f32 0.0, %v163
    %v165 = vpop.f32.mrb[0].mxu0
    %v166 = vpop.f32.mrb[0].mxu0
    %v167 = vadd.f32 0.0, %v166
    %v168 = vpop.f32.mrb[0].mxu0
    %169 = vmatprep.mubr.bf16.mxu0 0
    %170 = vmatmul.mubr.bf16.gmra.mrb[0].mxu0 %v111
    %v171 = vpop.f32.mrb[0].mxu0
    %v172 = vadd.f32 0.0, %v171
    %v173 = vpop.f32.mrb[0].mxu0
    %v174 = vpop.f32.mrb[0].mxu0
    %v175 = vadd.f32 0.0, %v174
    %v176 = vpop.f32.mrb[0].mxu0
    %177 = vdwg.mxu0
    %v186 = vunpack.c.l.b16 %v48
    %v187 = vunpack.c.l.b16 %v49
    %v188 = vunpack.c.l.b16 %v50
    %v189 = vunpack.c.l.b16 %v51
    %v190 = vunpack.c.l.b16 %v52
    %v191 = vunpack.c.l.b16 %v53
    %v192 = vunpack.c.l.b16 %v54
    %v193 = vunpack.c.l.b16 %v55
    %v194 = vpack.c.b16 %v187, %v186
    %v195 = vpack.c.b16 %v189, %v188
    %v196 = vpack.c.b16 %v191, %v190
    %v197 = vpack.c.b16 %v193, %v192
    %v199 = vsel %vm100, %v194, 0
    %v202 = vsel %vm100, %v195, 0
    %v205 = vsel %vm100, %v196, 0
    %v208 = vsel %vm100, %v197, 0
    %210 = vmatprep.subr.bf16.mxu0 0
    %211 = vmatpush1.bf16.msra.mxu0 %v76
    %212 = vmatprep.subr.bf16.mxu0 0
    %213 = vmatpush1.bf16.msra.mxu0 %v77
    %214 = vmatprep.subr.bf16.mxu0 0
    %215 = vmatpush1.bf16.msra.mxu0 %v78
    %216 = vmatprep.subr.bf16.mxu0 0
    %217 = vmatpush1.bf16.msra.mxu0 %v79
    %218 = vmatprep.subr.bf16.mxu0 0
    %219 = vmatpush1.bf16.msra.mxu0 0
    %220 = vmatprep.subr.bf16.mxu0 0
    %221 = vmatpush1.bf16.msra.mxu0 0
    %222 = vmatprep.subr.bf16.mxu0 0
    %223 = vmatpush1.bf16.msra.mxu0 0
    %224 = vmatprep.subr.bf16.mxu0 0
    %225 = vmatpush1.bf16.msra.mxu0 0
    %226 = vmatprep.subr.bf16.mxu0 0
    %227 = vmatpush1.bf16.msra.mxu0 0
    %228 = vmatprep.subr.bf16.mxu0 0
    %229 = vmatpush1.bf16.msra.mxu0 0
    %230 = vmatprep.subr.bf16.mxu0 0
    %231 = vmatpush1.bf16.msra.mxu0 0
    %232 = vmatprep.subr.bf16.mxu0 0
    %233 = vmatpush1.bf16.msra.mxu0 0
    %234 = vmatprep.subr.bf16.mxu0 0
    %235 = vmatpush1.bf16.msra.mxu0 0
    %236 = vmatprep.subr.bf16.mxu0 0
    %237 = vmatpush1.bf16.msra.mxu0 0
    %238 = vmatprep.subr.bf16.mxu0 0
    %239 = vmatpush1.bf16.msra.mxu0 0
    %240 = vmatprep.subr.bf16.mxu0 0
    %241 = vmatpush1.bf16.msra.mxu0 0
    %242 = vmatprep.mubr.bf16.mxu0 0
    %243 = vmatmul.mubr.bf16.gmra.mrb[0].mxu0 %v199
    %v244 = vpop.f32.mrb[0].mxu0
    %v245 = vadd.f32 0.0, %v244
    %v246 = vpop.f32.mrb[0].mxu0
    %v247 = vpop.f32.mrb[0].mxu0
    %v248 = vadd.f32 0.0, %v247
    %v249 = vpop.f32.mrb[0].mxu0
    %250 = vmatprep.mubr.bf16.mxu0 0
    %251 = vmatmul.mubr.bf16.gmra.mrb[0].mxu0 %v202
    %v252 = vpop.f32.mrb[0].mxu0
    %v253 = vadd.f32 0.0, %v252
    %v254 = vpop.f32.mrb[0].mxu0
    %v255 = vpop.f32.mrb[0].mxu0
    %v256 = vadd.f32 0.0, %v255
    %v257 = vpop.f32.mrb[0].mxu0
    %258 = vmatprep.mubr.bf16.mxu0 0
    %259 = vmatmul.mubr.bf16.gmra.mrb[0].mxu0 %v205
    %v260 = vpop.f32.mrb[0].mxu0
    %v261 = vadd.f32 0.0, %v260
    %v262 = vpop.f32.mrb[0].mxu0
    %v263 = vpop.f32.mrb[0].mxu0
    %v264 = vadd.f32 0.0, %v263
    %v265 = vpop.f32.mrb[0].mxu0
    %266 = vmatprep.mubr.bf16.mxu0 0
    %267 = vmatmul.mubr.bf16.gmra.mrb[0].mxu0 %v208
    %v268 = vpop.f32.mrb[0].mxu0
    %v269 = vadd.f32 0.0, %v268
    %v270 = vpop.f32.mrb[0].mxu0
    %v271 = vpop.f32.mrb[0].mxu0
    %v272 = vadd.f32 0.0, %v271
    %v273 = vpop.f32.mrb[0].mxu0
    %274 = vdwg.mxu0
    %v275 = vpack.c.bf16 %v151, %v148
    %v276 = vpack.c.bf16 %v159, %v156
    %v277 = vpack.c.bf16 %v167, %v164
    %v278 = vpack.c.bf16 %v175, %v172
    %v279 = vpack.c.bf16 %v248, %v245
    %v280 = vpack.c.bf16 %v256, %v253
    %v281 = vpack.c.bf16 %v264, %v261
    %v282 = vpack.c.bf16 %v272, %v269
    %287 = vrot.lane.b32.xlu0 %v275, 32
    %v288 = vpop.permute.xlu0 %287
    %289 = vrot.lane.b32.xlu0 %v276, 32
    %v290 = vpop.permute.xlu0 %289
    %291 = vrot.lane.b32.xlu0 %v277, 32
    %v292 = vpop.permute.xlu0 %291
    %293 = vrot.lane.b32.xlu0 %v278, 32
    %v294 = vpop.permute.xlu0 %293
    %299 = vrot.lane.b32.xlu0 %v279, 64
    %v300 = vpop.permute.xlu0 %299
    %301 = vrot.lane.b32.xlu0 %v280, 64
    %v302 = vpop.permute.xlu0 %301
    %303 = vrot.lane.b32.xlu0 %v281, 64
    %v304 = vpop.permute.xlu0 %303
    %305 = vrot.lane.b32.xlu0 %v282, 64
    %v306 = vpop.permute.xlu0 %305
    %vm307 = vcmask 261120
    %v310 = vsel %vm307, %v76, %v288
    %v313 = vsel %vm307, %v77, %v290
    %v316 = vsel %vm307, %v78, %v292
    %v319 = vsel %vm307, %v79, %v294
    %v321 = vsel %vm100, %v310, %v300
    %v323 = vsel %vm100, %v313, %v302
    %v325 = vsel %vm100, %v316, %v304
    %v327 = vsel %vm100, %v319, %v306
    %v340 = vunpack.c.l.b16 %v64
    %v341 = vunpack.c.l.b16 %v65
    %v342 = vunpack.c.l.b16 %v66
    %v343 = vunpack.c.l.b16 %v67
    %v344 = vunpack.c.l.b16 %v68
    %v345 = vunpack.c.l.b16 %v69
    %v346 = vunpack.c.l.b16 %v70
    %v347 = vunpack.c.l.b16 %v71
    %v348 = vunpack.c.l.b16 %v72
    %v349 = vunpack.c.l.b16 %v73
    %v350 = vunpack.c.l.b16 %v74
    %v351 = vunpack.c.l.b16 %v75
    %v352 = vpack.c.b16 %v341, %v340
    %v353 = vpack.c.b16 %v343, %v342
    %v354 = vpack.c.b16 %v345, %v344
    %v355 = vpack.c.b16 %v347, %v346
    %v356 = vpack.c.b16 %v349, %v348
    %v357 = vpack.c.b16 %v351, %v350
    %vm364 = vcmask 785408
    %v365 = vsel %vm364, %v321, 0
    %v367 = vsel %vm364, %v323, 0
    %v369 = vsel %vm364, %v325, 0
    %v371 = vsel %vm364, %v327, 0
    %373 = vmatprep.subr.bf16.mxu0 0
    %374 = vmatpush1.bf16.msra.mxu0 %v352
    %375 = vmatprep.subr.bf16.mxu0 0
    %376 = vmatpush1.bf16.msra.mxu0 %v353
    %377 = vmatprep.subr.bf16.mxu0 0
    %378 = vmatpush1.bf16.msra.mxu0 %v354
    %379 = vmatprep.subr.bf16.mxu0 0
    %380 = vmatpush1.bf16.msra.mxu0 %v355
    %381 = vmatprep.subr.bf16.mxu0 0
    %382 = vmatpush1.bf16.msra.mxu0 %v356
    %383 = vmatprep.subr.bf16.mxu0 0
    %384 = vmatpush1.bf16.msra.mxu0 %v357
    %385 = vmatprep.subr.bf16.mxu0 0
    %386 = vmatpush1.bf16.msra.mxu0 0
    %387 = vmatprep.subr.bf16.mxu0 0
    %388 = vmatpush1.bf16.msra.mxu0 0
    %389 = vmatprep.subr.bf16.mxu0 0
    %390 = vmatpush1.bf16.msra.mxu0 0
    %391 = vmatprep.subr.bf16.mxu0 0
    %392 = vmatpush1.bf16.msra.mxu0 0
    %393 = vmatprep.subr.bf16.mxu0 0
    %394 = vmatpush1.bf16.msra.mxu0 0
    %395 = vmatprep.subr.bf16.mxu0 0
    %396 = vmatpush1.bf16.msra.mxu0 0
    %397 = vmatprep.subr.bf16.mxu0 0
    %398 = vmatpush1.bf16.msra.mxu0 0
    %399 = vmatprep.subr.bf16.mxu0 0
    %400 = vmatpush1.bf16.msra.mxu0 0
    %401 = vmatprep.subr.bf16.mxu0 0
    %402 = vmatpush1.bf16.msra.mxu0 0
    %403 = vmatprep.subr.bf16.mxu0 0
    %404 = vmatpush1.bf16.msra.mxu0 0
    %405 = vmatprep.mubr.bf16.mxu0 0
    %406 = vmatmul.mubr.bf16.gmra.mrb[0].mxu0 %v365
    %v407 = vpop.f32.mrb[0].mxu0
    %v408 = vadd.f32 0.0, %v407
    %v409 = vpop.f32.mrb[0].mxu0
    %v410 = vpop.f32.mrb[0].mxu0
    %v411 = vadd.f32 0.0, %v410
    %v412 = vpop.f32.mrb[0].mxu0
    %413 = vmatprep.mubr.bf16.mxu0 0
    %414 = vmatmul.mubr.bf16.gmra.mrb[0].mxu0 %v367
    %v415 = vpop.f32.mrb[0].mxu0
    %v416 = vadd.f32 0.0, %v415
    %v417 = vpop.f32.mrb[0].mxu0
    %v418 = vpop.f32.mrb[0].mxu0
    %v419 = vadd.f32 0.0, %v418
    %v420 = vpop.f32.mrb[0].mxu0
    %421 = vmatprep.mubr.bf16.mxu0 0
    %422 = vmatmul.mubr.bf16.gmra.mrb[0].mxu0 %v369
    %v423 = vpop.f32.mrb[0].mxu0
    %v424 = vadd.f32 0.0, %v423
    %v425 = vpop.f32.mrb[0].mxu0
    %v426 = vpop.f32.mrb[0].mxu0
    %v427 = vadd.f32 0.0, %v426
    %v428 = vpop.f32.mrb[0].mxu0
    %429 = vmatprep.mubr.bf16.mxu0 0
    %430 = vmatmul.mubr.bf16.gmra.mrb[0].mxu0 %v371
    %v431 = vpop.f32.mrb[0].mxu0
    %v432 = vadd.f32 0.0, %v431
    %v433 = vpop.f32.mrb[0].mxu0
    %v434 = vpop.f32.mrb[0].mxu0
    %v435 = vadd.f32 0.0, %v434
    %v436 = vpop.f32.mrb[0].mxu0
    %437 = vdwg.mxu0
    %v438 = vmax.f32 %v408, 0.0
    %v439 = vmax.f32 %v411, 0.0
    %v440 = vmax.f32 %v416, 0.0
    %v441 = vmax.f32 %v419, 0.0
    %v442 = vmax.f32 %v424, 0.0
    %v443 = vmax.f32 %v427, 0.0
    %v444 = vmax.f32 %v432, 0.0
    %v445 = vmax.f32 %v435, 0.0
    %v446 = vld [vmem:[%s4] sm:$0xf]
    %v447 = vld [vmem:[%s4 + $0x4] sm:$0xf]
    %v448 = vld [vmem:[%s4 + $0x8] sm:$0xf]
    %v449 = vld [vmem:[%s4 + $0xc] sm:$0xf]
    %v450 = vld [vmem:[%s4 + $0x10] sm:$0xf]
    %v451 = vld [vmem:[%s4 + $0x14] sm:$0xf]
    %v452 = vpack.c.bf16 %v439, %v438
    %v453 = vpack.c.bf16 %v441, %v440
    %v454 = vpack.c.bf16 %v443, %v442
    %v455 = vpack.c.bf16 %v445, %v444
    %456 = vmatprep.subr.bf16.mxu0 0
    %457 = vmatpush1.bf16.msra.mxu0 %v452
    %458 = vmatprep.subr.bf16.mxu0 0
    %459 = vmatpush1.bf16.msra.mxu0 %v453
    %460 = vmatprep.subr.bf16.mxu0 0
    %461 = vmatpush1.bf16.msra.mxu0 %v454
    %462 = vmatprep.subr.bf16.mxu0 0
    %463 = vmatpush1.bf16.msra.mxu0 %v455
    %464 = vmatprep.subr.bf16.mxu0 0
    %465 = vmatpush1.bf16.msra.mxu0 0
    %466 = vmatprep.subr.bf16.mxu0 0
    %467 = vmatpush1.bf16.msra.mxu0 0
    %468 = vmatprep.subr.bf16.mxu0 0
    %469 = vmatpush1.bf16.msra.mxu0 0
    %470 = vmatprep.subr.bf16.mxu0 0
    %471 = vmatpush1.bf16.msra.mxu0 0
    %472 = vmatprep.subr.bf16.mxu0 0
    %473 = vmatpush1.bf16.msra.mxu0 0
    %474 = vmatprep.subr.bf16.mxu0 0
    %475 = vmatpush1.bf16.msra.mxu0 0
    %476 = vmatprep.subr.bf16.mxu0 0
    %477 = vmatpush1.bf16.msra.mxu0 0
    %478 = vmatprep.subr.bf16.mxu0 0
    %479 = vmatpush1.bf16.msra.mxu0 0
    %480 = vmatprep.subr.bf16.mxu0 0
    %481 = vmatpush1.bf16.msra.mxu0 0
    %482 = vmatprep.subr.bf16.mxu0 0
    %483 = vmatpush1.bf16.msra.mxu0 0
    %484 = vmatprep.subr.bf16.mxu0 0
    %485 = vmatpush1.bf16.msra.mxu0 0
    %486 = vmatprep.subr.bf16.mxu0 0
    %487 = vmatpush1.bf16.msra.mxu0 0
    %488 = vmatprep.mubr.bf16.mxu0 0
    %489 = vmatmul.mubr.bf16.gmra.mrb[0].mxu0 %v102
    %v490 = vpop.f32.mrb[0].mxu0
    %v491 = vadd.f32 0.0, %v490
    %v492 = vpop.f32.mrb[0].mxu0
    %v493 = vpop.f32.mrb[0].mxu0
    %v494 = vadd.f32 0.0, %v493
    %v495 = vpop.f32.mrb[0].mxu0
    %496 = vmatprep.mubr.bf16.mxu0 0
    %497 = vmatmul.mubr.bf16.gmra.mrb[0].mxu0 %v105
    %v498 = vpop.f32.mrb[0].mxu0
    %v499 = vadd.f32 0.0, %v498
    %v500 = vpop.f32.mrb[0].mxu0
    %v501 = vpop.f32.mrb[0].mxu0
    %v502 = vadd.f32 0.0, %v501
    %v503 = vpop.f32.mrb[0].mxu0
    %504 = vmatprep.mubr.bf16.mxu0 0
    %505 = vmatmul.mubr.bf16.gmra.mrb[0].mxu0 %v108
    %v506 = vpop.f32.mrb[0].mxu0
    %v507 = vadd.f32 0.0, %v506
    %v508 = vpop.f32.mrb[0].mxu0
    %v509 = vpop.f32.mrb[0].mxu0
    %v510 = vadd.f32 0.0, %v509
    %v511 = vpop.f32.mrb[0].mxu0
    %512 = vmatprep.mubr.bf16.mxu0 0
    %513 = vmatmul.mubr.bf16.gmra.mrb[0].mxu0 %v111
    %v514 = vpop.f32.mrb[0].mxu0
    %v515 = vadd.f32 0.0, %v514
    %v516 = vpop.f32.mrb[0].mxu0
    %v517 = vpop.f32.mrb[0].mxu0
    %v518 = vadd.f32 0.0, %v517
    %v519 = vpop.f32.mrb[0].mxu0
    %520 = vdwg.mxu0
    %521 = vmatprep.subr.bf16.mxu0 0
    %522 = vmatpush1.bf16.msra.mxu0 %v452
    %523 = vmatprep.subr.bf16.mxu0 0
    %524 = vmatpush1.bf16.msra.mxu0 %v453
    %525 = vmatprep.subr.bf16.mxu0 0
    %526 = vmatpush1.bf16.msra.mxu0 %v454
    %527 = vmatprep.subr.bf16.mxu0 0
    %528 = vmatpush1.bf16.msra.mxu0 %v455
    %529 = vmatprep.subr.bf16.mxu0 0
    %530 = vmatpush1.bf16.msra.mxu0 0
    %531 = vmatprep.subr.bf16.mxu0 0
    %532 = vmatpush1.bf16.msra.mxu0 0
    %533 = vmatprep.subr.bf16.mxu0 0
    %534 = vmatpush1.bf16.msra.mxu0 0
    %535 = vmatprep.subr.bf16.mxu0 0
    %536 = vmatpush1.bf16.msra.mxu0 0
    %537 = vmatprep.subr.bf16.mxu0 0
    %538 = vmatpush1.bf16.msra.mxu0 0
    %539 = vmatprep.subr.bf16.mxu0 0
    %540 = vmatpush1.bf16.msra.mxu0 0
    %541 = vmatprep.subr.bf16.mxu0 0
    %542 = vmatpush1.bf16.msra.mxu0 0
    %543 = vmatprep.subr.bf16.mxu0 0
    %544 = vmatpush1.bf16.msra.mxu0 0
    %545 = vmatprep.subr.bf16.mxu0 0
    %546 = vmatpush1.bf16.msra.mxu0 0
    %547 = vmatprep.subr.bf16.mxu0 0
    %548 = vmatpush1.bf16.msra.mxu0 0
    %549 = vmatprep.subr.bf16.mxu0 0
    %550 = vmatpush1.bf16.msra.mxu0 0
    %551 = vmatprep.subr.bf16.mxu0 0
    %552 = vmatpush1.bf16.msra.mxu0 0
    %553 = vmatprep.mubr.bf16.mxu0 0
    %554 = vmatmul.mubr.bf16.gmra.mrb[0].mxu0 %v199
    %v555 = vpop.f32.mrb[0].mxu0
    %v556 = vadd.f32 0.0, %v555
    %v557 = vpop.f32.mrb[0].mxu0
    %v558 = vpop.f32.mrb[0].mxu0
    %v559 = vadd.f32 0.0, %v558
    %v560 = vpop.f32.mrb[0].mxu0
    %561 = vmatprep.mubr.bf16.mxu0 0
    %562 = vmatmul.mubr.bf16.gmra.mrb[0].mxu0 %v202
    %v563 = vpop.f32.mrb[0].mxu0
    %v564 = vadd.f32 0.0, %v563
    %v565 = vpop.f32.mrb[0].mxu0
    %v566 = vpop.f32.mrb[0].mxu0
    %v567 = vadd.f32 0.0, %v566
    %v568 = vpop.f32.mrb[0].mxu0
    %569 = vmatprep.mubr.bf16.mxu0 0
    %570 = vmatmul.mubr.bf16.gmra.mrb[0].mxu0 %v205
    %v571 = vpop.f32.mrb[0].mxu0
    %v572 = vadd.f32 0.0, %v571
    %v573 = vpop.f32.mrb[0].mxu0
    %v574 = vpop.f32.mrb[0].mxu0
    %v575 = vadd.f32 0.0, %v574
    %v576 = vpop.f32.mrb[0].mxu0
    %577 = vmatprep.mubr.bf16.mxu0 0
    %578 = vmatmul.mubr.bf16.gmra.mrb[0].mxu0 %v208
    %v579 = vpop.f32.mrb[0].mxu0
    %v580 = vadd.f32 0.0, %v579
    %v581 = vpop.f32.mrb[0].mxu0
    %v582 = vpop.f32.mrb[0].mxu0
    %v583 = vadd.f32 0.0, %v582
    %v584 = vpop.f32.mrb[0].mxu0
    %585 = vdwg.mxu0
    %v586 = vpack.c.bf16 %v494, %v491
    %v587 = vpack.c.bf16 %v502, %v499
    %v588 = vpack.c.bf16 %v510, %v507
    %v589 = vpack.c.bf16 %v518, %v515
    %v590 = vpack.c.bf16 %v559, %v556
    %v591 = vpack.c.bf16 %v567, %v564
    %v592 = vpack.c.bf16 %v575, %v572
    %v593 = vpack.c.bf16 %v583, %v580
    %598 = vrot.lane.b32.xlu0 %v586, 16
    %v599 = vpop.permute.xlu0 %598
    %600 = vrot.lane.b32.xlu0 %v587, 16
    %v601 = vpop.permute.xlu0 %600
    %602 = vrot.lane.b32.xlu0 %v588, 16
    %v603 = vpop.permute.xlu0 %602
    %604 = vrot.lane.b32.xlu0 %v589, 16
    %v605 = vpop.permute.xlu0 %604
    %610 = vrot.lane.b32.xlu0 %v590, 32
    %v611 = vpop.permute.xlu0 %610
    %612 = vrot.lane.b32.xlu0 %v591, 32
    %v613 = vpop.permute.xlu0 %612
    %614 = vrot.lane.b32.xlu0 %v592, 32
    %v615 = vpop.permute.xlu0 %614
    %616 = vrot.lane.b32.xlu0 %v593, 32
    %v617 = vpop.permute.xlu0 %616
    %vm618 = vcmask 130048
    %v621 = vsel %vm618, %v452, %v599
    %v624 = vsel %vm618, %v453, %v601
    %v627 = vsel %vm618, %v454, %v603
    %v630 = vsel %vm618, %v455, %v605
    %v632 = vsel %vm307, %v621, %v611
    %v634 = vsel %vm307, %v624, %v613
    %v636 = vsel %vm307, %v627, %v615
    %v638 = vsel %vm307, %v630, %v617
    %v645 = vunpack.c.l.b16 %v446
    %v646 = vunpack.c.l.b16 %v447
    %v647 = vunpack.c.l.b16 %v448
    %v648 = vunpack.c.l.b16 %v449
    %v649 = vunpack.c.l.b16 %v450
    %v650 = vunpack.c.l.b16 %v451
    %v651 = vpack.c.b16 %v646, %v645
    %v652 = vpack.c.b16 %v648, %v647
    %v653 = vpack.c.b16 %v650, %v649
    %vm657 = vcmask 392192
    %v658 = vsel %vm657, %v632, 0
    %v660 = vsel %vm657, %v634, 0
    %v662 = vsel %vm657, %v636, 0
    %v664 = vsel %vm657, %v638, 0
    %666 = vmatprep.subr.bf16.mxu0 0
    %667 = vmatpush1.bf16.msra.mxu0 %v651
    %668 = vmatprep.subr.bf16.mxu0 0
    %669 = vmatpush1.bf16.msra.mxu0 %v652
    %670 = vmatprep.subr.bf16.mxu0 0
    %671 = vmatpush1.bf16.msra.mxu0 %v653
    %672 = vmatprep.subr.bf16.mxu0 0
    %673 = vmatpush1.bf16.msra.mxu0 0
    %674 = vmatprep.subr.bf16.mxu0 0
    %675 = vmatpush1.bf16.msra.mxu0 0
    %676 = vmatprep.subr.bf16.mxu0 0
    %677 = vmatpush1.bf16.msra.mxu0 0
    %678 = vmatprep.subr.bf16.mxu0 0
    %679 = vmatpush1.bf16.msra.mxu0 0
    %680 = vmatprep.subr.bf16.mxu0 0
    %681 = vmatpush1.bf16.msra.mxu0 0
    %682 = vmatprep.subr.bf16.mxu0 0
    %683 = vmatpush1.bf16.msra.mxu0 0
    %684 = vmatprep.subr.bf16.mxu0 0
    %685 = vmatpush1.bf16.msra.mxu0 0
    %686 = vmatprep.subr.bf16.mxu0 0
    %687 = vmatpush1.bf16.msra.mxu0 0
    %688 = vmatprep.subr.bf16.mxu0 0
    %689 = vmatpush1.bf16.msra.mxu0 0
    %690 = vmatprep.subr.bf16.mxu0 0
    %691 = vmatpush1.bf16.msra.mxu0 0
    %692 = vmatprep.subr.bf16.mxu0 0
    %693 = vmatpush1.bf16.msra.mxu0 0
    %694 = vmatprep.subr.bf16.mxu0 0
    %695 = vmatpush1.bf16.msra.mxu0 0
    %696 = vmatprep.subr.bf16.mxu0 0
    %697 = vmatpush1.bf16.msra.mxu0 0
    %698 = vmatprep.mubr.bf16.mxu0 0
    %699 = vmatmul.mubr.bf16.gmra.mrb[0].mxu0 %v658
    %v700 = vpop.f32.mrb[0].mxu0
    %v701 = vadd.f32 0.0, %v700
    %v702 = vpop.f32.mrb[0].mxu0
    %v703 = vpop.f32.mrb[0].mxu0
    %v704 = vadd.f32 0.0, %v703
    %v705 = vpop.f32.mrb[0].mxu0
    %706 = vmatprep.mubr.bf16.mxu0 0
    %707 = vmatmul.mubr.bf16.gmra.mrb[0].mxu0 %v660
    %v708 = vpop.f32.mrb[0].mxu0
    %v709 = vadd.f32 0.0, %v708
    %v710 = vpop.f32.mrb[0].mxu0
    %v711 = vpop.f32.mrb[0].mxu0
    %v712 = vadd.f32 0.0, %v711
    %v713 = vpop.f32.mrb[0].mxu0
    %714 = vmatprep.mubr.bf16.mxu0 0
    %715 = vmatmul.mubr.bf16.gmra.mrb[0].mxu0 %v662
    %v716 = vpop.f32.mrb[0].mxu0
    %v717 = vadd.f32 0.0, %v716
    %v718 = vpop.f32.mrb[0].mxu0
    %v719 = vpop.f32.mrb[0].mxu0
    %v720 = vadd.f32 0.0, %v719
    %v721 = vpop.f32.mrb[0].mxu0
    %722 = vmatprep.mubr.bf16.mxu0 0
    %723 = vmatmul.mubr.bf16.gmra.mrb[0].mxu0 %v664
    %v724 = vpop.f32.mrb[0].mxu0
    %v725 = vadd.f32 0.0, %v724
    %v726 = vpop.f32.mrb[0].mxu0
    %v727 = vpop.f32.mrb[0].mxu0
    %v728 = vadd.f32 0.0, %v727
    %v729 = vpop.f32.mrb[0].mxu0
    %730 = vdwg.mxu0
    %v731 = vmax.f32 %v701, 0.0
    %v732 = vmax.f32 %v704, 0.0
    %v733 = vmax.f32 %v709, 0.0
    %v734 = vmax.f32 %v712, 0.0
    %v735 = vmax.f32 %v717, 0.0
    %v736 = vmax.f32 %v720, 0.0
    %v737 = vmax.f32 %v725, 0.0
    %v738 = vmax.f32 %v728, 0.0
    %v739 = vld [vmem:[%s5] sm:$0xf]
    %v740 = vld [vmem:[%s5 + $0x4] sm:$0xf]
    %v741 = vld [vmem:[%s5 + $0x8] sm:$0xf]
    %v742 = vld [vmem:[%s5 + $0xc] sm:$0xf]
    %v743 = vld [vmem:[%s5 + $0x10] sm:$0xf]
    %v744 = vld [vmem:[%s5 + $0x14] sm:$0xf]
    %v745 = vpack.c.bf16 %v732, %v731
    %v746 = vpack.c.bf16 %v734, %v733
    %v747 = vpack.c.bf16 %v736, %v735
    %v748 = vpack.c.bf16 %v738, %v737
    %749 = vmatprep.subr.bf16.mxu0 0
    %750 = vmatpush1.bf16.msra.mxu0 %v745
    %751 = vmatprep.subr.bf16.mxu0 0
    %752 = vmatpush1.bf16.msra.mxu0 %v746
    %753 = vmatprep.subr.bf16.mxu0 0
    %754 = vmatpush1.bf16.msra.mxu0 %v747
    %755 = vmatprep.subr.bf16.mxu0 0
    %756 = vmatpush1.bf16.msra.mxu0 %v748
    %757 = vmatprep.subr.bf16.mxu0 0
    %758 = vmatpush1.bf16.msra.mxu0 0
    %759 = vmatprep.subr.bf16.mxu0 0
    %760 = vmatpush1.bf16.msra.mxu0 0
    %761 = vmatprep.subr.bf16.mxu0 0
    %762 = vmatpush1.bf16.msra.mxu0 0
    %763 = vmatprep.subr.bf16.mxu0 0
    %764 = vmatpush1.bf16.msra.mxu0 0
    %765 = vmatprep.subr.bf16.mxu0 0
    %766 = vmatpush1.bf16.msra.mxu0 0
    %767 = vmatprep.subr.bf16.mxu0 0
    %768 = vmatpush1.bf16.msra.mxu0 0
    %769 = vmatprep.subr.bf16.mxu0 0
    %770 = vmatpush1.bf16.msra.mxu0 0
    %771 = vmatprep.subr.bf16.mxu0 0
    %772 = vmatpush1.bf16.msra.mxu0 0
    %773 = vmatprep.subr.bf16.mxu0 0
    %774 = vmatpush1.bf16.msra.mxu0 0
    %775 = vmatprep.subr.bf16.mxu0 0
    %776 = vmatpush1.bf16.msra.mxu0 0
    %777 = vmatprep.subr.bf16.mxu0 0
    %778 = vmatpush1.bf16.msra.mxu0 0
    %779 = vmatprep.subr.bf16.mxu0 0
    %780 = vmatpush1.bf16.msra.mxu0 0
    %781 = vmatprep.mubr.bf16.mxu0 0
    %782 = vmatmul.mubr.bf16.gmra.mrb[0].mxu0 %v102
    %v783 = vpop.f32.mrb[0].mxu0
    %v784 = vadd.f32 0.0, %v783
    %v785 = vpop.f32.mrb[0].mxu0
    %v786 = vpop.f32.mrb[0].mxu0
    %v787 = vadd.f32 0.0, %v786
    %v788 = vpop.f32.mrb[0].mxu0
    %789 = vmatprep.mubr.bf16.mxu0 0
    %790 = vmatmul.mubr.bf16.gmra.mrb[0].mxu0 %v105
    %v791 = vpop.f32.mrb[0].mxu0
    %v792 = vadd.f32 0.0, %v791
    %v793 = vpop.f32.mrb[0].mxu0
    %v794 = vpop.f32.mrb[0].mxu0
    %v795 = vadd.f32 0.0, %v794
    %v796 = vpop.f32.mrb[0].mxu0
    %797 = vmatprep.mubr.bf16.mxu0 0
    %798 = vmatmul.mubr.bf16.gmra.mrb[0].mxu0 %v108
    %v799 = vpop.f32.mrb[0].mxu0
    %v800 = vadd.f32 0.0, %v799
    %v801 = vpop.f32.mrb[0].mxu0
    %v802 = vpop.f32.mrb[0].mxu0
    %v803 = vadd.f32 0.0, %v802
    %v804 = vpop.f32.mrb[0].mxu0
    %805 = vmatprep.mubr.bf16.mxu0 0
    %806 = vmatmul.mubr.bf16.gmra.mrb[0].mxu0 %v111
    %v807 = vpop.f32.mrb[0].mxu0
    %v808 = vadd.f32 0.0, %v807
    %v809 = vpop.f32.mrb[0].mxu0
    %v810 = vpop.f32.mrb[0].mxu0
    %v811 = vadd.f32 0.0, %v810
    %v812 = vpop.f32.mrb[0].mxu0
    %813 = vdwg.mxu0
    %814 = vmatprep.subr.bf16.mxu0 0
    %815 = vmatpush1.bf16.msra.mxu0 %v745
    %816 = vmatprep.subr.bf16.mxu0 0
    %817 = vmatpush1.bf16.msra.mxu0 %v746
    %818 = vmatprep.subr.bf16.mxu0 0
    %819 = vmatpush1.bf16.msra.mxu0 %v747
    %820 = vmatprep.subr.bf16.mxu0 0
    %821 = vmatpush1.bf16.msra.mxu0 %v748
    %822 = vmatprep.subr.bf16.mxu0 0
    %823 = vmatpush1.bf16.msra.mxu0 0
    %824 = vmatprep.subr.bf16.mxu0 0
    %825 = vmatpush1.bf16.msra.mxu0 0
    %826 = vmatprep.subr.bf16.mxu0 0
    %827 = vmatpush1.bf16.msra.mxu0 0
    %828 = vmatprep.subr.bf16.mxu0 0
    %829 = vmatpush1.bf16.msra.mxu0 0
    %830 = vmatprep.subr.bf16.mxu0 0
    %831 = vmatpush1.bf16.msra.mxu0 0
    %832 = vmatprep.subr.bf16.mxu0 0
    %833 = vmatpush1.bf16.msra.mxu0 0
    %834 = vmatprep.subr.bf16.mxu0 0
    %835 = vmatpush1.bf16.msra.mxu0 0
    %836 = vmatprep.subr.bf16.mxu0 0
    %837 = vmatpush1.bf16.msra.mxu0 0
    %838 = vmatprep.subr.bf16.mxu0 0
    %839 = vmatpush1.bf16.msra.mxu0 0
    %840 = vmatprep.subr.bf16.mxu0 0
    %841 = vmatpush1.bf16.msra.mxu0 0
    %842 = vmatprep.subr.bf16.mxu0 0
    %843 = vmatpush1.bf16.msra.mxu0 0
    %844 = vmatprep.subr.bf16.mxu0 0
    %845 = vmatpush1.bf16.msra.mxu0 0
    %846 = vmatprep.mubr.bf16.mxu0 0
    %847 = vmatmul.mubr.bf16.gmra.mrb[0].mxu0 %v199
    %v848 = vpop.f32.mrb[0].mxu0
    %v849 = vadd.f32 0.0, %v848
    %v850 = vpop.f32.mrb[0].mxu0
    %v851 = vpop.f32.mrb[0].mxu0
    %v852 = vadd.f32 0.0, %v851
    %v853 = vpop.f32.mrb[0].mxu0
    %854 = vmatprep.mubr.bf16.mxu0 0
    %855 = vmatmul.mubr.bf16.gmra.mrb[0].mxu0 %v202
    %v856 = vpop.f32.mrb[0].mxu0
    %v857 = vadd.f32 0.0, %v856
    %v858 = vpop.f32.mrb[0].mxu0
    %v859 = vpop.f32.mrb[0].mxu0
    %v860 = vadd.f32 0.0, %v859
    %v861 = vpop.f32.mrb[0].mxu0
    %862 = vmatprep.mubr.bf16.mxu0 0
    %863 = vmatmul.mubr.bf16.gmra.mrb[0].mxu0 %v205
    %v864 = vpop.f32.mrb[0].mxu0
    %v865 = vadd.f32 0.0, %v864
    %v866 = vpop.f32.mrb[0].mxu0
    %v867 = vpop.f32.mrb[0].mxu0
    %v868 = vadd.f32 0.0, %v867
    %v869 = vpop.f32.mrb[0].mxu0
    %870 = vmatprep.mubr.bf16.mxu0 0
    %871 = vmatmul.mubr.bf16.gmra.mrb[0].mxu0 %v208
    %v872 = vpop.f32.mrb[0].mxu0
    %v873 = vadd.f32 0.0, %v872
    %v874 = vpop.f32.mrb[0].mxu0
    %v875 = vpop.f32.mrb[0].mxu0
    %v876 = vadd.f32 0.0, %v875
    %v877 = vpop.f32.mrb[0].mxu0
    %878 = vdwg.mxu0
    %v879 = vpack.c.bf16 %v787, %v784
    %v880 = vpack.c.bf16 %v795, %v792
    %v881 = vpack.c.bf16 %v803, %v800
    %v882 = vpack.c.bf16 %v811, %v808
    %v883 = vpack.c.bf16 %v852, %v849
    %v884 = vpack.c.bf16 %v860, %v857
    %v885 = vpack.c.bf16 %v868, %v865
    %v886 = vpack.c.bf16 %v876, %v873
    %891 = vrot.lane.b32.xlu0 %v879, 16
    %v892 = vpop.permute.xlu0 %891
    %893 = vrot.lane.b32.xlu0 %v880, 16
    %v894 = vpop.permute.xlu0 %893
    %895 = vrot.lane.b32.xlu0 %v881, 16
    %v896 = vpop.permute.xlu0 %895
    %897 = vrot.lane.b32.xlu0 %v882, 16
    %v898 = vpop.permute.xlu0 %897
    %903 = vrot.lane.b32.xlu0 %v883, 32
    %v904 = vpop.permute.xlu0 %903
    %905 = vrot.lane.b32.xlu0 %v884, 32
    %v906 = vpop.permute.xlu0 %905
    %907 = vrot.lane.b32.xlu0 %v885, 32
    %v908 = vpop.permute.xlu0 %907
    %909 = vrot.lane.b32.xlu0 %v886, 32
    %v910 = vpop.permute.xlu0 %909
    %v913 = vsel %vm618, %v745, %v892
    %v916 = vsel %vm618, %v746, %v894
    %v919 = vsel %vm618, %v747, %v896
    %v922 = vsel %vm618, %v748, %v898
    %v924 = vsel %vm307, %v913, %v904
    %v926 = vsel %vm307, %v916, %v906
    %v928 = vsel %vm307, %v919, %v908
    %v930 = vsel %vm307, %v922, %v910
    %v937 = vunpack.c.l.b16 %v739
    %v938 = vunpack.c.l.b16 %v740
    %v939 = vunpack.c.l.b16 %v741
    %v940 = vunpack.c.l.b16 %v742
    %v941 = vunpack.c.l.b16 %v743
    %v942 = vunpack.c.l.b16 %v744
    %v943 = vpack.c.b16 %v938, %v937
    %v944 = vpack.c.b16 %v940, %v939
    %v945 = vpack.c.b16 %v942, %v941
    %v949 = vsel %vm657, %v924, 0
    %v951 = vsel %vm657, %v926, 0
    %v953 = vsel %vm657, %v928, 0
    %v955 = vsel %vm657, %v930, 0
    %957 = vmatprep.subr.bf16.mxu0 0
    %958 = vmatpush1.bf16.msra.mxu0 %v943
    %959 = vmatprep.subr.bf16.mxu0 0
    %960 = vmatpush1.bf16.msra.mxu0 %v944
    %961 = vmatprep.subr.bf16.mxu0 0
    %962 = vmatpush1.bf16.msra.mxu0 %v945
    %963 = vmatprep.subr.bf16.mxu0 0
    %964 = vmatpush1.bf16.msra.mxu0 0
    %965 = vmatprep.subr.bf16.mxu0 0
    %966 = vmatpush1.bf16.msra.mxu0 0
    %967 = vmatprep.subr.bf16.mxu0 0
    %968 = vmatpush1.bf16.msra.mxu0 0
    %969 = vmatprep.subr.bf16.mxu0 0
    %970 = vmatpush1.bf16.msra.mxu0 0
    %971 = vmatprep.subr.bf16.mxu0 0
    %972 = vmatpush1.bf16.msra.mxu0 0
    %973 = vmatprep.subr.bf16.mxu0 0
    %974 = vmatpush1.bf16.msra.mxu0 0
    %975 = vmatprep.subr.bf16.mxu0 0
    %976 = vmatpush1.bf16.msra.mxu0 0
    %977 = vmatprep.subr.bf16.mxu0 0
    %978 = vmatpush1.bf16.msra.mxu0 0
    %979 = vmatprep.subr.bf16.mxu0 0
    %980 = vmatpush1.bf16.msra.mxu0 0
    %981 = vmatprep.subr.bf16.mxu0 0
    %982 = vmatpush1.bf16.msra.mxu0 0
    %983 = vmatprep.subr.bf16.mxu0 0
    %984 = vmatpush1.bf16.msra.mxu0 0
    %985 = vmatprep.subr.bf16.mxu0 0
    %986 = vmatpush1.bf16.msra.mxu0 0
    %987 = vmatprep.subr.bf16.mxu0 0
    %988 = vmatpush1.bf16.msra.mxu0 0
    %989 = vmatprep.mubr.bf16.mxu0 0
    %990 = vmatmul.mubr.bf16.gmra.mrb[0].mxu0 %v949
    %v991 = vpop.f32.mrb[0].mxu0
    %v992 = vadd.f32 0.0, %v991
    %v993 = vpop.f32.mrb[0].mxu0
    %v994 = vpop.f32.mrb[0].mxu0
    %v995 = vadd.f32 0.0, %v994
    %v996 = vpop.f32.mrb[0].mxu0
    %997 = vmatprep.mubr.bf16.mxu0 0
    %998 = vmatmul.mubr.bf16.gmra.mrb[0].mxu0 %v951
    %v999 = vpop.f32.mrb[0].mxu0
    %v1000 = vadd.f32 0.0, %v999
    %v1001 = vpop.f32.mrb[0].mxu0
    %v1002 = vpop.f32.mrb[0].mxu0
    %v1003 = vadd.f32 0.0, %v1002
    %v1004 = vpop.f32.mrb[0].mxu0
    %1005 = vmatprep.mubr.bf16.mxu0 0
    %1006 = vmatmul.mubr.bf16.gmra.mrb[0].mxu0 %v953
    %v1007 = vpop.f32.mrb[0].mxu0
    %v1008 = vadd.f32 0.0, %v1007
    %v1009 = vpop.f32.mrb[0].mxu0
    %v1010 = vpop.f32.mrb[0].mxu0
    %v1011 = vadd.f32 0.0, %v1010
    %v1012 = vpop.f32.mrb[0].mxu0
    %1013 = vmatprep.mubr.bf16.mxu0 0
    %1014 = vmatmul.mubr.bf16.gmra.mrb[0].mxu0 %v955
    %v1015 = vpop.f32.mrb[0].mxu0
    %v1016 = vadd.f32 0.0, %v1015
    %v1017 = vpop.f32.mrb[0].mxu0
    %v1018 = vpop.f32.mrb[0].mxu0
    %v1019 = vadd.f32 0.0, %v1018
    %v1020 = vpop.f32.mrb[0].mxu0
    %1021 = vdwg.mxu0
    %v1022 = vmax.f32 %v992, 0.0
    %v1023 = vmax.f32 %v995, 0.0
    %v1024 = vmax.f32 %v1000, 0.0
    %v1025 = vmax.f32 %v1003, 0.0
    %v1026 = vmax.f32 %v1008, 0.0
    %v1027 = vmax.f32 %v1011, 0.0
    %v1028 = vmax.f32 %v1016, 0.0
    %v1029 = vmax.f32 %v1019, 0.0
    %1038 = vrot.lane.b32.xlu0 %v731, 16
    %v1039 = vpop.permute.xlu0 %1038
    %1040 = vrot.lane.b32.xlu0 %v732, 16
    %v1041 = vpop.permute.xlu0 %1040
    %1042 = vrot.lane.b32.xlu0 %v733, 16
    %v1043 = vpop.permute.xlu0 %1042
    %1044 = vrot.lane.b32.xlu0 %v734, 16
    %v1045 = vpop.permute.xlu0 %1044
    %1046 = vrot.lane.b32.xlu0 %v735, 16
    %v1047 = vpop.permute.xlu0 %1046
    %1048 = vrot.lane.b32.xlu0 %v736, 16
    %v1049 = vpop.permute.xlu0 %1048
    %1050 = vrot.lane.b32.xlu0 %v737, 16
    %v1051 = vpop.permute.xlu0 %1050
    %1052 = vrot.lane.b32.xlu0 %v738, 16
    %v1053 = vpop.permute.xlu0 %1052
    %1070 = vrot.lane.b32.xlu0 %v1022, 32
    %v1071 = vpop.permute.xlu0 %1070
    %1072 = vrot.lane.b32.xlu0 %v1023, 32
    %v1073 = vpop.permute.xlu0 %1072
    %1074 = vrot.lane.b32.xlu0 %v1024, 32
    %v1075 = vpop.permute.xlu0 %1074
    %1076 = vrot.lane.b32.xlu0 %v1025, 32
    %v1077 = vpop.permute.xlu0 %1076
    %1078 = vrot.lane.b32.xlu0 %v1026, 32
    %v1079 = vpop.permute.xlu0 %1078
    %1080 = vrot.lane.b32.xlu0 %v1027, 32
    %v1081 = vpop.permute.xlu0 %1080
    %1082 = vrot.lane.b32.xlu0 %v1028, 32
    %v1083 = vpop.permute.xlu0 %1082
    %1084 = vrot.lane.b32.xlu0 %v1029, 32
    %v1085 = vpop.permute.xlu0 %1084
    %v1094 = vsel %vm618, %v438, %v1039
    %v1095 = vsel %vm618, %v439, %v1041
    %v1096 = vsel %vm618, %v440, %v1043
    %v1097 = vsel %vm618, %v441, %v1045
    %v1098 = vsel %vm618, %v442, %v1047
    %v1099 = vsel %vm618, %v443, %v1049
    %v1100 = vsel %vm618, %v444, %v1051
    %v1101 = vsel %vm618, %v445, %v1053
    %v1102 = vsel %vm307, %v1094, %v1071
    %v1103 = vsel %vm307, %v1095, %v1073
    %v1104 = vsel %vm307, %v1096, %v1075
    %v1105 = vsel %vm307, %v1097, %v1077
    %v1106 = vsel %vm307, %v1098, %v1079
    %v1107 = vsel %vm307, %v1099, %v1081
    %v1108 = vsel %vm307, %v1100, %v1083
    %v1109 = vsel %vm307, %v1101, %v1085
    %v1110 = vsel %vm657, %v1102, 0.0
    %v1111 = vsel %vm657, %v1103, 0.0
    %v1112 = vsel %vm657, %v1104, 0.0
    %v1113 = vsel %vm657, %v1105, 0.0
    %v1114 = vsel %vm657, %v1106, 0.0
    %v1115 = vsel %vm657, %v1107, 0.0
    %v1116 = vsel %vm657, %v1108, 0.0
    %v1117 = vsel %vm657, %v1109, 0.0
    %1118 = vst [vmem:[#allocation2] sm:$0xff] %v1110
    %1119 = vst [vmem:[#allocation2 + $0x8] sm:$0xff] %v1111
    %1120 = vst [vmem:[#allocation2 + $0x10] sm:$0xff] %v1112
    %1121 = vst [vmem:[#allocation2 + $0x18] sm:$0xff] %v1113
    %1122 = vst [vmem:[#allocation2 + $0x20] sm:$0xff] %v1114
    %1123 = vst [vmem:[#allocation2 + $0x28] sm:$0xff] %v1115
    %1124 = vst [vmem:[#allocation2 + $0x30] sm:$0xff] %v1116
    %1125 = vst [vmem:[#allocation2 + $0x38] sm:$0xff] %v1117
    %v1126 = vpack.c.bf16 %v1103, %v1102
    %v1127 = vpack.c.bf16 %v1105, %v1104
    %v1128 = vpack.c.bf16 %v1107, %v1106
    %v1129 = vpack.c.bf16 %v1109, %v1108
    %v1130 = vld [vmem:[%s6] sm:$0xff]
    %v1131 = vld [vmem:[%s6 + $0x8] sm:$0xff]
    %v1132 = vld [vmem:[%s6 + $0x10] sm:$0xff]
    %v1133 = vld [vmem:[%s6 + $0x18] sm:$0xff]
    %v1134 = vld [vmem:[%s6 + $0x20] sm:$0xff]
    %v1135 = vld [vmem:[%s6 + $0x28] sm:$0xff]
    %v1136 = vld [vmem:[%s7] sm:$0x3]
    %v1138 = vlaneseq
    %v1139 = vshrl.u32 %v1138, 7
    %v1140 = vsub.s32 0, %v1139
    %v1141 = vrot.slane %v1136, %v1140
    %v1142 = vlaneseq
    %v1143 = vshrl.u32 %v1142, 7
    %v1144 = vsub.s32 1, %v1143
    %v1145 = vrot.slane %v1136, %v1144
    %v1154 = vunpack.c.l.b16 %v1130
    %v1155 = vunpack.c.h.b16 %v1130
    %v1156 = vunpack.c.l.b16 %v1131
    %v1157 = vunpack.c.h.b16 %v1131
    %v1158 = vunpack.c.l.b16 %v1132
    %v1159 = vunpack.c.h.b16 %v1132
    %v1160 = vunpack.c.l.b16 %v1133
    %v1161 = vunpack.c.h.b16 %v1133
    %v1162 = vunpack.c.l.b16 %v1134
    %v1163 = vunpack.c.h.b16 %v1134
    %v1164 = vunpack.c.l.b16 %v1135
    %v1165 = vunpack.c.h.b16 %v1135
    %v1166 = vpack.c.b16 %v1156, %v1154
    %v1167 = vpack.c.b16 %v1157, %v1155
    %v1168 = vpack.c.b16 %v1160, %v1158
    %v1169 = vpack.c.b16 %v1161, %v1159
    %v1170 = vpack.c.b16 %v1164, %v1162
    %v1171 = vpack.c.b16 %v1165, %v1163
    %v1179 = vsel %vm657, %v1126, 0
    %v1182 = vsel %vm657, %v1127, 0
    %v1185 = vsel %vm657, %v1128, 0
    %v1188 = vsel %vm657, %v1129, 0
    %1190 = vmatprep.subr.bf16.mxu0 %v1167
    %1191 = vmatpush1.bf16.msra.mxu0 %v1166
    %1192 = vmatprep.subr.bf16.mxu0 %v1169
    %1193 = vmatpush1.bf16.msra.mxu0 %v1168
    %1194 = vmatprep.subr.bf16.mxu0 %v1171
    %1195 = vmatpush1.bf16.msra.mxu0 %v1170
    %1196 = vmatprep.subr.bf16.mxu0 0
    %1197 = vmatpush1.bf16.msra.mxu0 0
    %1198 = vmatprep.subr.bf16.mxu0 0
    %1199 = vmatpush1.bf16.msra.mxu0 0
    %1200 = vmatprep.subr.bf16.mxu0 0
    %1201 = vmatpush1.bf16.msra.mxu0 0
    %1202 = vmatprep.subr.bf16.mxu0 0
    %1203 = vmatpush1.bf16.msra.mxu0 0
    %1204 = vmatprep.subr.bf16.mxu0 0
    %1205 = vmatpush1.bf16.msra.mxu0 0
    %1206 = vmatprep.subr.bf16.mxu0 0
    %1207 = vmatpush1.bf16.msra.mxu0 0
    %1208 = vmatprep.subr.bf16.mxu0 0
    %1209 = vmatpush1.bf16.msra.mxu0 0
    %1210 = vmatprep.subr.bf16.mxu0 0
    %1211 = vmatpush1.bf16.msra.mxu0 0
    %1212 = vmatprep.subr.bf16.mxu0 0
    %1213 = vmatpush1.bf16.msra.mxu0 0
    %1214 = vmatprep.subr.bf16.mxu0 0
    %1215 = vmatpush1.bf16.msra.mxu0 0
    %1216 = vmatprep.subr.bf16.mxu0 0
    %1217 = vmatpush1.bf16.msra.mxu0 0
    %1218 = vmatprep.subr.bf16.mxu0 0
    %1219 = vmatpush1.bf16.msra.mxu0 0
    %1220 = vmatprep.subr.bf16.mxu0 0
    %1221 = vmatpush1.bf16.msra.mxu0 0
    %1222 = vmatprep.mubr.bf16.mxu0 0
    %1223 = vmatmul.mubr.bf16.gmra.mrb[0].mxu0 %v1179
    %v1224 = vpop.f32.mrb[0].mxu0
    %v1225 = vadd.f32 %v1141, %v1224
    %v1226 = vpop.f32.mrb[0].mxu0
    %v1227 = vadd.f32 %v1145, %v1226
    %v1228 = vpop.f32.mrb[0].mxu0
    %v1229 = vadd.f32 %v1141, %v1228
    %v1230 = vpop.f32.mrb[0].mxu0
    %v1231 = vadd.f32 %v1145, %v1230
    %1232 = vmatprep.mubr.bf16.mxu0 0
    %1233 = vmatmul.mubr.bf16.gmra.mrb[0].mxu0 %v1182
    %v1234 = vpop.f32.mrb[0].mxu0
    %v1235 = vadd.f32 %v1141, %v1234
    %v1236 = vpop.f32.mrb[0].mxu0
    %v1237 = vadd.f32 %v1145, %v1236
    %v1238 = vpop.f32.mrb[0].mxu0
    %v1239 = vadd.f32 %v1141, %v1238
    %v1240 = vpop.f32.mrb[0].mxu0
    %v1241 = vadd.f32 %v1145, %v1240
    %1242 = vmatprep.mubr.bf16.mxu0 0
    %1243 = vmatmul.mubr.bf16.gmra.mrb[0].mxu0 %v1185
    %v1244 = vpop.f32.mrb[0].mxu0
    %v1245 = vadd.f32 %v1141, %v1244
    %v1246 = vpop.f32.mrb[0].mxu0
    %v1247 = vadd.f32 %v1145, %v1246
    %v1248 = vpop.f32.mrb[0].mxu0
    %v1249 = vadd.f32 %v1141, %v1248
    %v1250 = vpop.f32.mrb[0].mxu0
    %v1251 = vadd.f32 %v1145, %v1250
    %1252 = vmatprep.mubr.bf16.mxu0 0
    %1253 = vmatmul.mubr.bf16.gmra.mrb[0].mxu0 %v1188
    %v1254 = vpop.f32.mrb[0].mxu0
    %v1255 = vadd.f32 %v1141, %v1254
    %v1256 = vpop.f32.mrb[0].mxu0
    %v1257 = vadd.f32 %v1145, %v1256
    %v1258 = vpop.f32.mrb[0].mxu0
    %v1259 = vadd.f32 %v1141, %v1258
    %v1260 = vpop.f32.mrb[0].mxu0
    %v1261 = vadd.f32 %v1145, %v1260
    %1262 = vdwg.mxu0
    %v1263 = vmax.f32 %v1225, 0.0
    %v1264 = vmax.f32 %v1227, 0.0
    %v1265 = vmax.f32 %v1229, 0.0
    %v1266 = vmax.f32 %v1231, 0.0
    %v1267 = vmax.f32 %v1235, 0.0
    %v1268 = vmax.f32 %v1237, 0.0
    %v1269 = vmax.f32 %v1239, 0.0
    %v1270 = vmax.f32 %v1241, 0.0
    %v1271 = vmax.f32 %v1245, 0.0
    %v1272 = vmax.f32 %v1247, 0.0
    %v1273 = vmax.f32 %v1249, 0.0
    %v1274 = vmax.f32 %v1251, 0.0
    %v1275 = vmax.f32 %v1255, 0.0
    %v1276 = vmax.f32 %v1257, 0.0
    %v1277 = vmax.f32 %v1259, 0.0
    %v1278 = vmax.f32 %v1261, 0.0
    %v1279 = vpack.c.bf16 %v1265, %v1263
    %v1280 = vpack.c.bf16 %v1266, %v1264
    %v1281 = vpack.c.bf16 %v1269, %v1267
    %v1282 = vpack.c.bf16 %v1270, %v1268
    %v1283 = vpack.c.bf16 %v1273, %v1271
    %v1284 = vpack.c.bf16 %v1274, %v1272
    %v1285 = vpack.c.bf16 %v1277, %v1275
    %v1286 = vpack.c.bf16 %v1278, %v1276
    %v1287 = vld [vmem:[%s8] sm:$0xf]
    %v1288 = vld [vmem:[%s8 + $0x4] sm:$0xf]
    %v1289 = vld [vmem:[%s8 + $0x8] sm:$0xf]
    %v1290 = vld [vmem:[%s8 + $0xc] sm:$0xf]
    %v1291 = vld [vmem:[%s8 + $0x10] sm:$0xf]
    %v1292 = vld [vmem:[%s8 + $0x14] sm:$0xf]
    %v1293 = vld [vmem:[%s8 + $0x18] sm:$0xf]
    %v1294 = vld [vmem:[%s8 + $0x1c] sm:$0xf]
    %v1295 = vld [vmem:[%s8 + $0x20] sm:$0xf]
    %v1296 = vld [vmem:[%s8 + $0x24] sm:$0xf]
    %v1297 = vld [vmem:[%s8 + $0x28] sm:$0xf]
    %v1298 = vld [vmem:[%s8 + $0x2c] sm:$0xf]
    %v1299 = vld [vmem:[%s8 + $0x30] sm:$0xf]
    %v1300 = vld [vmem:[%s8 + $0x34] sm:$0xf]
    %v1301 = vld [vmem:[%s8 + $0x38] sm:$0xf]
    %v1302 = vld [vmem:[%s8 + $0x3c] sm:$0xf]
    %v1303 = vld [vmem:[%s8 + $0x40] sm:$0xf]
    %v1304 = vld [vmem:[%s8 + $0x44] sm:$0xf]
    %v1305 = vld [vmem:[%s8 + $0x48] sm:$0xf]
    %v1306 = vld [vmem:[%s8 + $0x4c] sm:$0xf]
    %v1307 = vld [vmem:[%s8 + $0x50] sm:$0xf]
    %v1308 = vld [vmem:[%s8 + $0x54] sm:$0xf]
    %v1309 = vld [vmem:[%s8 + $0x58] sm:$0xf]
    %v1310 = vld [vmem:[%s8 + $0x5c] sm:$0xf]
    %v1311 = vld [vmem:[%s8 + $0x60] sm:$0xf]
    %v1312 = vld [vmem:[%s8 + $0x64] sm:$0xf]
    %v1313 = vld [vmem:[%s8 + $0x68] sm:$0xf]
    %v1314 = vld [vmem:[%s8 + $0x6c] sm:$0xf]
    %v1315 = vld [vmem:[%s8 + $0x70] sm:$0xf]
    %v1316 = vld [vmem:[%s8 + $0x74] sm:$0xf]
    %v1317 = vld [vmem:[%s8 + $0x78] sm:$0xf]
    %v1318 = vld [vmem:[%s8 + $0x7c] sm:$0xf]
    %v1319 = vld [vmem:[%s9] sm:$0x1]
    %v1321 = vlaneseq
    %v1322 = vshrl.u32 %v1321, 7
    %v1323 = vsub.s32 0, %v1322
    %v1324 = vrot.slane %v1319, %v1323
    %v1358 = vunpack.c.l.b16 %v1287
    %v1359 = vunpack.c.l.b16 %v1288
    %v1360 = vunpack.c.l.b16 %v1289
    %v1361 = vunpack.c.l.b16 %v1290
    %v1362 = vunpack.c.l.b16 %v1291
    %v1363 = vunpack.c.l.b16 %v1292
    %v1364 = vunpack.c.l.b16 %v1293
    %v1365 = vunpack.c.l.b16 %v1294
    %v1366 = vunpack.c.l.b16 %v1295
    %v1367 = vunpack.c.l.b16 %v1296
    %v1368 = vunpack.c.l.b16 %v1297
    %v1369 = vunpack.c.l.b16 %v1298
    %v1370 = vunpack.c.l.b16 %v1299
    %v1371 = vunpack.c.l.b16 %v1300
    %v1372 = vunpack.c.l.b16 %v1301
    %v1373 = vunpack.c.l.b16 %v1302
    %v1374 = vunpack.c.l.b16 %v1303
    %v1375 = vunpack.c.l.b16 %v1304
    %v1376 = vunpack.c.l.b16 %v1305
    %v1377 = vunpack.c.l.b16 %v1306
    %v1378 = vunpack.c.l.b16 %v1307
    %v1379 = vunpack.c.l.b16 %v1308
    %v1380 = vunpack.c.l.b16 %v1309
    %v1381 = vunpack.c.l.b16 %v1310
    %v1382 = vunpack.c.l.b16 %v1311
    %v1383 = vunpack.c.l.b16 %v1312
    %v1384 = vunpack.c.l.b16 %v1313
    %v1385 = vunpack.c.l.b16 %v1314
    %v1386 = vunpack.c.l.b16 %v1315
    %v1387 = vunpack.c.l.b16 %v1316
    %v1388 = vunpack.c.l.b16 %v1317
    %v1389 = vunpack.c.l.b16 %v1318
    %v1390 = vpack.c.b16 %v1359, %v1358
    %v1391 = vpack.c.b16 %v1361, %v1360
    %v1392 = vpack.c.b16 %v1363, %v1362
    %v1393 = vpack.c.b16 %v1365, %v1364
    %v1394 = vpack.c.b16 %v1367, %v1366
    %v1395 = vpack.c.b16 %v1369, %v1368
    %v1396 = vpack.c.b16 %v1371, %v1370
    %v1397 = vpack.c.b16 %v1373, %v1372
    %v1398 = vpack.c.b16 %v1375, %v1374
    %v1399 = vpack.c.b16 %v1377, %v1376
    %v1400 = vpack.c.b16 %v1379, %v1378
    %v1401 = vpack.c.b16 %v1381, %v1380
    %v1402 = vpack.c.b16 %v1383, %v1382
    %v1403 = vpack.c.b16 %v1385, %v1384
    %v1404 = vpack.c.b16 %v1387, %v1386
    %v1405 = vpack.c.b16 %v1389, %v1388
    %1422 = vmatprep.subr.bf16.mxu0 0
    %1423 = vmatpush1.bf16.msra.mxu0 %v1390
    %1424 = vmatprep.subr.bf16.mxu0 0
    %1425 = vmatpush1.bf16.msra.mxu0 %v1391
    %1426 = vmatprep.subr.bf16.mxu0 0
    %1427 = vmatpush1.bf16.msra.mxu0 %v1392
    %1428 = vmatprep.subr.bf16.mxu0 0
    %1429 = vmatpush1.bf16.msra.mxu0 %v1393
    %1430 = vmatprep.subr.bf16.mxu0 0
    %1431 = vmatpush1.bf16.msra.mxu0 %v1394
    %1432 = vmatprep.subr.bf16.mxu0 0
    %1433 = vmatpush1.bf16.msra.mxu0 %v1395
    %1434 = vmatprep.subr.bf16.mxu0 0
    %1435 = vmatpush1.bf16.msra.mxu0 %v1396
    %1436 = vmatprep.subr.bf16.mxu0 0
    %1437 = vmatpush1.bf16.msra.mxu0 %v1397
    %1438 = vmatprep.subr.bf16.mxu0 0
    %1439 = vmatpush1.bf16.msra.mxu0 %v1398
    %1440 = vmatprep.subr.bf16.mxu0 0
    %1441 = vmatpush1.bf16.msra.mxu0 %v1399
    %1442 = vmatprep.subr.bf16.mxu0 0
    %1443 = vmatpush1.bf16.msra.mxu0 %v1400
    %1444 = vmatprep.subr.bf16.mxu0 0
    %1445 = vmatpush1.bf16.msra.mxu0 %v1401
    %1446 = vmatprep.subr.bf16.mxu0 0
    %1447 = vmatpush1.bf16.msra.mxu0 %v1402
    %1448 = vmatprep.subr.bf16.mxu0 0
    %1449 = vmatpush1.bf16.msra.mxu0 %v1403
    %1450 = vmatprep.subr.bf16.mxu0 0
    %1451 = vmatpush1.bf16.msra.mxu0 %v1404
    %1452 = vmatprep.subr.bf16.mxu0 0
    %1453 = vmatpush1.bf16.msra.mxu0 %v1405
    %1454 = vmatprep.mubr.bf16.mxu0 %v1280
    %1455 = vmatmul.mubr.bf16.gmra.mrb[0].mxu0 %v1279
    %v1456 = vpop.f32.mrb[0].mxu0
    %v1457 = vadd.f32 %v1324, %v1456
    %v1458 = vpop.f32.mrb[0].mxu0
    %v1459 = vpop.f32.mrb[0].mxu0
    %v1460 = vadd.f32 %v1324, %v1459
    %v1461 = vpop.f32.mrb[0].mxu0
    %1462 = vmatprep.mubr.bf16.mxu0 %v1282
    %1463 = vmatmul.mubr.bf16.gmra.mrb[0].mxu0 %v1281
    %v1464 = vpop.f32.mrb[0].mxu0
    %v1465 = vadd.f32 %v1324, %v1464
    %v1466 = vpop.f32.mrb[0].mxu0
    %v1467 = vpop.f32.mrb[0].mxu0
    %v1468 = vadd.f32 %v1324, %v1467
    %v1469 = vpop.f32.mrb[0].mxu0
    %1470 = vmatprep.mubr.bf16.mxu0 %v1284
    %1471 = vmatmul.mubr.bf16.gmra.mrb[0].mxu0 %v1283
    %v1472 = vpop.f32.mrb[0].mxu0
    %v1473 = vadd.f32 %v1324, %v1472
    %v1474 = vpop.f32.mrb[0].mxu0
    %v1475 = vpop.f32.mrb[0].mxu0
    %v1476 = vadd.f32 %v1324, %v1475
    %v1477 = vpop.f32.mrb[0].mxu0
    %1478 = vmatprep.mubr.bf16.mxu0 %v1286
    %1479 = vmatmul.mubr.bf16.gmra.mrb[0].mxu0 %v1285
    %v1480 = vpop.f32.mrb[0].mxu0
    %v1481 = vadd.f32 %v1324, %v1480
    %v1482 = vpop.f32.mrb[0].mxu0
    %v1483 = vpop.f32.mrb[0].mxu0
    %v1484 = vadd.f32 %v1324, %v1483
    %v1485 = vpop.f32.mrb[0].mxu0
    %1486 = vdwg.mxu0
    %1487 = vst [vmem:[#allocation4] sm:$0xff] %v1457
    %1488 = vst [vmem:[#allocation4 + $0x8] sm:$0xff] %v1460
    %1489 = vst [vmem:[#allocation4 + $0x10] sm:$0xff] %v1465
    %1490 = vst [vmem:[#allocation4 + $0x18] sm:$0xff] %v1468
    %1491 = vst [vmem:[#allocation4 + $0x20] sm:$0xff] %v1473
    %1492 = vst [vmem:[#allocation4 + $0x28] sm:$0xff] %v1476
    %1493 = vst [vmem:[#allocation4 + $0x30] sm:$0xff] %v1481
    %1494 = vst [vmem:[#allocation4 + $0x38] sm:$0xff] %v1484
    // Predicated region
    $region42: #{tpu_custom_call.1} parent=1 // pred_check
      _
    $region43: #{tpu_custom_call.1} parent=1 // pred_check_branch
      %1496 = sbr.rel (0) target = $region45
    $region44: #{tpu_custom_call.1} parent=1 // pred_region
      %s1498 = ssub.s32 1024, 1024
      %1499 = vsyncadd [#allocation3], %s1498
      %s1500 = sshll.u32 [#allocation2], 4
      %s1501 = int_to_ptr.vmem [resolvable:$true] %s1500
      %1506 = dma.vmem_to_hbm [thread:$0]  %s1501, 1024, %s10, [#allocation3], 128, 128, 8
    $region45: #{tpu_custom_call.1} parent=1 // pred_fallthru
      _
    // Predicated region
    $region46: #{tpu_custom_call.1} parent=1 // pred_check
      _
    $region47: #{tpu_custom_call.1} parent=1 // pred_check_branch
      %1508 = sbr.rel (0) target = $region49
    $region48: #{tpu_custom_call.1} parent=1 // pred_region
      %s1510 = ssub.s32 1024, 1024
      %1511 = vsyncadd [#allocation5], %s1510
      %s1512 = sshll.u32 [#allocation4], 4
      %s1513 = int_to_ptr.vmem [resolvable:$true] %s1512
      %1518 = dma.vmem_to_hbm [thread:$0]  %s1513, 1024, %s11, [#allocation5], 128, 128, 8
    $region49: #{tpu_custom_call.1} parent=1 // pred_fallthru
      _
    // Predicated region
    $region50: #{tpu_custom_call.1} parent=1 // pred_check
      _
    $region51: #{tpu_custom_call.1} parent=1 // pred_check_branch
      %1520 = sbr.rel (0) target = $region53
    $region52: #{tpu_custom_call.1} parent=1 // pred_region
      %1521 = dma.done [#allocation3], 1024
    $region53: #{tpu_custom_call.1} parent=1 // pred_fallthru
      _
    // Predicated region
    $region54: #{tpu_custom_call.1} parent=1 // pred_check
      _
    $region55: #{tpu_custom_call.1} parent=1 // pred_check_branch
      %1523 = sbr.rel (0) target = $region57
    $region56: #{tpu_custom_call.1} parent=1 // pred_region
      %1524 = dma.done [#allocation5], 1024
    $region57: #{tpu_custom_call.1} parent=1 // pred_fallthru
      _
    %1525 = vsyncpa [#allocation3], 1
    %1526 = vsyncpa [#allocation5], 1

</llo_original>
